<compile_context>
chip_gen: v7x
topology: tpu7x:2x2x1
jax: 0.10.0
libtpu: 0.0.40
codegen_flags: <defaults>
</compile_context>

<pallas_src>
import jax
import jax.numpy as jnp
from jax.experimental import pallas as pl
from jax.experimental.pallas import tpu as pltpu

THETA = 256   # fixed by the module: nn.Linear(input_dim, 256)
PAD = 128     # lane padding for out_dim and for the stored-A column axis


def gcn1_kernel(h_ref, mask_ref, eye_ref, exp_ref, gamma_ref, beta_ref,
                wcat_ref, bcat_ref, out_ref, a_ref):
    Hb = h_ref[...]                                # (G, N, C): G graphs per step
    G, N, C = Hb.shape

    # ---- BatchNorm1d(input_dim): per-graph training-mode stats (biased var),
    #      two-pass for safety, gamma folded into the scale (2 VPU passes) ----
    mean = jnp.mean(Hb, axis=1, keepdims=True)                 # (G, 1, C)
    diff = Hb - mean
    var = jnp.mean(diff * diff, axis=1, keepdims=True)         # biased (torch BN)
    scale = gamma_ref[...] * jax.lax.rsqrt(var + 1e-5)         # (G, 1, C)
    Hn = diff * scale + beta_ref[...]                          # (G, N, C)

    # ---- Fused Linear(theta)+Linear(out): ONE (G*N, C) @ (C, 256+PAD) matmul ----
    HxHo = jnp.dot(Hn.reshape(G * N, C), wcat_ref[...],
                   preferred_element_type=jnp.float32) + bcat_ref[...]
    Hx = HxHo[:, :THETA].reshape(G, N, THETA)      # theta branch (lane-aligned)
    Ho = HxHo[:, THETA:].reshape(G, N, PAD)        # out branch, zero-padded lanes

    # ---- A = clamp(sigmoid(Hx Hx^T), min=0.1) * mask + I  (per graph) ----
    S = jnp.einsum('gnd,gmd->gnm', Hx, Hx,
                   preferred_element_type=jnp.float32)          # (G, N, N)
    A = jnp.maximum(jax.nn.sigmoid(S), 0.1) * mask_ref[...] + eye_ref[...]

    # Lane-pad A to 128 columns for the store via exp = [I_N | 0]  -> full-lane vst.
    a_ref[...] = jnp.dot(A.reshape(G * N, N), exp_ref[...],
                         preferred_element_type=jnp.float32).reshape(G, N, PAD)

    # ---- output = LeakyReLU(D^{-1/2} A D^{-1/2} Ho) without A_hat or any
    #      transpose: row-scale Ho by d_is, matmul, row-scale the result ----
    d = jnp.sum(A, axis=2, keepdims=True)          # (G, N, 1), >= 1 thanks to +I
    d_is = jax.lax.rsqrt(d)                        # single EUP op
    out = d_is * jnp.einsum('gnm,gmo->gno', A, d_is * Ho,
                            preferred_element_type=jnp.float32)
    out_ref[...] = jnp.where(out >= 0.0, out, 0.01 * out)


def gcn1_forward(H, mask, gamma, beta, w_theta, b_theta, w_out, b_out):
    """H: (B, N, C) batch of graphs; mask/params shared across the batch."""
    B, N, C = H.shape
    OUT = w_out.shape[1]
    assert OUT <= PAD and N <= PAD, "toy-shape kernel: out_dim and N must be <= 128"
    NCAT = THETA + PAD

    # Fuse + lane-pad the two Linear layers: (C, 256+128) weight, (1, 256+128) bias.
    w_cat = jnp.concatenate(
        [w_theta, jnp.pad(w_out, ((0, 0), (0, PAD - OUT)))], axis=1)
    b_cat = jnp.concatenate(
        [b_theta, jnp.pad(b_out, ((0, 0), (0, PAD - OUT)))], axis=1)

    eye = jnp.eye(N, dtype=jnp.float32)                          # I_N
    expander = jnp.concatenate(
        [eye, jnp.zeros((N, PAD - N), jnp.float32)], axis=1)     # [I_N | 0]

    # 2 grid steps (one per TensorCore on v7x); 1 step if B is odd.
    num_steps = 2 if (B % 2 == 0 and B >= 2) else 1
    G = B // num_steps

    out_pad, A_pad = pl.pallas_call(
        gcn1_kernel,
        out_shape=(jax.ShapeDtypeStruct((B, N, PAD), jnp.float32),
                   jax.ShapeDtypeStruct((B, N, PAD), jnp.float32)),
        grid=(num_steps,),
        in_specs=[
            pl.BlockSpec((G, N, C), lambda s: (s, 0, 0)),        # H (G graphs)
            pl.BlockSpec((N, N), lambda s: (0, 0)),              # mask (shared)
            pl.BlockSpec((N, N), lambda s: (0, 0)),              # eye  (shared)
            pl.BlockSpec((N, PAD), lambda s: (0, 0)),            # [I | 0] expander
            pl.BlockSpec((1, C), lambda s: (0, 0)),              # gamma
            pl.BlockSpec((1, C), lambda s: (0, 0)),              # beta
            pl.BlockSpec((C, NCAT), lambda s: (0, 0)),           # [W_theta | W_out 0]
            pl.BlockSpec((1, NCAT), lambda s: (0, 0)),           # [b_theta | b_out 0]
        ],
        out_specs=(pl.BlockSpec((G, N, PAD), lambda s: (s, 0, 0)),
                   pl.BlockSpec((G, N, PAD), lambda s: (s, 0, 0))),
        compiler_params=pltpu.CompilerParams(
            dimension_semantics=("parallel",)),
    )(H, mask, eye, expander, gamma, beta, w_cat, b_cat)

    # Cheap XLA slices back to the logical shapes, outside the kernel.
    return out_pad[:, :, :OUT], A_pad[:, :, :N]


def reference_forward(H, mask, gamma, beta, w_theta, b_theta, w_out, b_out):
    """Pure-JAX per-graph reference matching the torch module semantics."""
    def one(Hg):
        mean = jnp.mean(Hg, axis=0, keepdims=True)
        var = jnp.mean((Hg - mean) ** 2, axis=0, keepdims=True)
        Hn = (Hg - mean) / jnp.sqrt(var + 1e-5) * gamma + beta
        Hx = Hn @ w_theta + b_theta
        S = jnp.maximum(jax.nn.sigmoid(Hx @ Hx.T), 0.1)
        A = S * mask + jnp.eye(Hg.shape[0], dtype=jnp.float32)
        d_is = jnp.power(jnp.sum(A, axis=1), -0.5)
        A_hat = A * d_is[:, None] * d_is[None, :]
        out = A_hat @ (Hn @ w_out + b_out)
        return jnp.where(out >= 0, out, 0.01 * out), A
    return jax.vmap(one)(H)


if __name__ == "__main__":
    key = jax.random.PRNGKey(0)
    k_h, k_a, k_wt, k_bt, k_wo, k_bo, k_g, k_b = jax.random.split(key, 8)

    B = 4           # graphs per call (amortizes launch/DMA overhead)
    N = 16          # number of graph nodes (A is N x N)
    C = 32          # input_dim
    OUT = 16        # output_dim

    # batch of node features
    H = jax.random.normal(k_h, (B, N, C), dtype=jnp.float32)

    # synthetic non-negative sparse-ish adjacency -> mask = ceil(A*1e-5)
    A0 = jax.random.uniform(k_a, (N, N), dtype=jnp.float32)
    A0 = (A0 + A0.T) * 0.5
    A0 = jnp.where(A0 > 0.6, A0, 0.0)
    mask = jnp.ceil(A0 * 1e-5)

    # deterministic parameters (shapes from the module __init__)
    gamma = jnp.ones((1, C), dtype=jnp.float32) + 0.05 * jax.random.normal(k_g, (1, C))
    beta = 0.05 * jax.random.normal(k_b, (1, C), dtype=jnp.float32)
    w_theta = jax.random.normal(k_wt, (C, THETA), dtype=jnp.float32) / jnp.sqrt(C)
    b_theta = 0.01 * jax.random.normal(k_bt, (1, THETA), dtype=jnp.float32)
    w_out = jax.random.normal(k_wo, (C, OUT), dtype=jnp.float32) / jnp.sqrt(C)
    b_out = 0.01 * jax.random.normal(k_bo, (1, OUT), dtype=jnp.float32)
    # NOTE: self.sigma1 is a parameter of the module but is unused in forward().

    out, A = jax.block_until_ready(
        gcn1_forward(H, mask, gamma, beta, w_theta, b_theta, w_out, b_out))

    ref_out, ref_A = reference_forward(H, mask, gamma, beta,
                                       w_theta, b_theta, w_out, b_out)
    assert out.shape == (B, N, OUT) and A.shape == (B, N, N)
    assert jnp.allclose(out, ref_out, atol=1e-4, rtol=1e-4)
    assert jnp.allclose(A, ref_A, atol=1e-4, rtol=1e-4)

    print("KERNEL_OK")
</pallas_src>

<mosaic_0001>
module attributes {stable_mosaic.version = 11 : i64} {
  func.func @gcn1_kernel(%arg0: i32, %arg1: memref<2x16x32xf32, #tpu.memory_space<vmem>>, %arg2: memref<16x16xf32, #tpu.memory_space<vmem>>, %arg3: memref<16x16xf32, #tpu.memory_space<vmem>>, %arg4: memref<16x128xf32, #tpu.memory_space<vmem>>, %arg5: memref<1x32xf32, #tpu.memory_space<vmem>>, %arg6: memref<1x32xf32, #tpu.memory_space<vmem>>, %arg7: memref<32x384xf32, #tpu.memory_space<vmem>>, %arg8: memref<1x384xf32, #tpu.memory_space<vmem>>, %arg9: memref<2x16x128xf32, #tpu.memory_space<vmem>>, %arg10: memref<2x16x128xf32, #tpu.memory_space<vmem>>) attributes {dimension_semantics = [#tpu.dimension_semantics<parallel>], iteration_bounds = array<i64: 2>, scalar_prefetch = 0 : i64, scratch_operands = 0 : i64, tpu.core_type = #tpu.core_type<tc>, window_params = [{transform_indices = @transform_0, window_bounds = array<i64: 2, 16, 32>}, {pipeline_mode = #tpu.pipeline_mode<synchronous>, transform_indices = @transform_1, window_bounds = array<i64: 16, 16>}, {pipeline_mode = #tpu.pipeline_mode<synchronous>, transform_indices = @transform_2, window_bounds = array<i64: 16, 16>}, {pipeline_mode = #tpu.pipeline_mode<synchronous>, transform_indices = @transform_3, window_bounds = array<i64: 16, 128>}, {pipeline_mode = #tpu.pipeline_mode<synchronous>, transform_indices = @transform_4, window_bounds = array<i64: 1, 32>}, {pipeline_mode = #tpu.pipeline_mode<synchronous>, transform_indices = @transform_5, window_bounds = array<i64: 1, 32>}, {pipeline_mode = #tpu.pipeline_mode<synchronous>, transform_indices = @transform_6, window_bounds = array<i64: 32, 384>}, {pipeline_mode = #tpu.pipeline_mode<synchronous>, transform_indices = @transform_7, window_bounds = array<i64: 1, 384>}, {transform_indices = @transform_8, window_bounds = array<i64: 2, 16, 128>}, {transform_indices = @transform_9, window_bounds = array<i64: 2, 16, 128>}]} {
    %c0 = arith.constant 0 : index
    %c0_0 = arith.constant 0 : index
    %c0_1 = arith.constant 0 : index
    %0 = vector.load %arg1[%c0, %c0_0, %c0_1] : memref<2x16x32xf32, #tpu.memory_space<vmem>>, vector<2x16x32xf32>
    %cst = arith.constant dense<0.000000e+00> : vector<2x32xf32>
    %1 = vector.multi_reduction <add>, %0, %cst [1] : vector<2x16x32xf32> to vector<2x32xf32>
    %2 = vector.shape_cast %1 : vector<2x32xf32> to vector<2x1x32xf32>
    %cst_2 = arith.constant 1.600000e+01 : f32
    %3 = vector.broadcast %cst_2 : f32 to vector<2x1x32xf32>
    %4 = arith.divf %2, %3 : vector<2x1x32xf32>
    %5 = vector.broadcast %4 : vector<2x1x32xf32> to vector<2x16x32xf32>
    %6 = arith.subf %0, %5 : vector<2x16x32xf32>
    %7 = arith.mulf %6, %6 : vector<2x16x32xf32>
    %cst_3 = arith.constant dense<0.000000e+00> : vector<2x32xf32>
    %8 = vector.multi_reduction <add>, %7, %cst_3 [1] : vector<2x16x32xf32> to vector<2x32xf32>
    %9 = vector.shape_cast %8 : vector<2x32xf32> to vector<2x1x32xf32>
    %cst_4 = arith.constant 1.600000e+01 : f32
    %10 = vector.broadcast %cst_4 : f32 to vector<2x1x32xf32>
    %11 = arith.divf %9, %10 : vector<2x1x32xf32>
    %c0_5 = arith.constant 0 : index
    %c0_6 = arith.constant 0 : index
    %12 = vector.load %arg5[%c0_5, %c0_6] : memref<1x32xf32, #tpu.memory_space<vmem>>, vector<1x32xf32>
    %cst_7 = arith.constant 9.99999974E-6 : f32
    %13 = vector.broadcast %cst_7 : f32 to vector<2x1x32xf32>
    %14 = arith.addf %11, %13 : vector<2x1x32xf32>
    %15 = math.rsqrt %14 : vector<2x1x32xf32>
    %16 = vector.shape_cast %12 : vector<1x32xf32> to vector<1x1x32xf32>
    %17 = vector.broadcast %16 : vector<1x1x32xf32> to vector<2x1x32xf32>
    %18 = arith.mulf %17, %15 : vector<2x1x32xf32>
    %19 = vector.broadcast %18 : vector<2x1x32xf32> to vector<2x16x32xf32>
    %20 = arith.mulf %6, %19 : vector<2x16x32xf32>
    %c0_8 = arith.constant 0 : index
    %c0_9 = arith.constant 0 : index
    %21 = vector.load %arg6[%c0_8, %c0_9] : memref<1x32xf32, #tpu.memory_space<vmem>>, vector<1x32xf32>
    %22 = vector.shape_cast %21 : vector<1x32xf32> to vector<1x1x32xf32>
    %23 = vector.broadcast %22 : vector<1x1x32xf32> to vector<2x16x32xf32>
    %24 = arith.addf %20, %23 : vector<2x16x32xf32>
    %25 = vector.shape_cast %24 : vector<2x16x32xf32> to vector<32x32xf32>
    %c0_10 = arith.constant 0 : index
    %c0_11 = arith.constant 0 : index
    %26 = vector.load %arg7[%c0_10, %c0_11] : memref<32x384xf32, #tpu.memory_space<vmem>>, vector<32x384xf32>
    %cst_12 = arith.constant dense<0.000000e+00> : vector<32x384xf32>
    %27 = tpu.matmul %25, %26, %cst_12 {dimension_numbers = #tpu.dot_dimension_numbers<[1], [0], [0], [1], [0, 0, 1, 1], [], []>} : vector<32x32xf32>, vector<32x384xf32>, vector<32x384xf32> -> vector<32x384xf32>
    %c0_13 = arith.constant 0 : index
    %c0_14 = arith.constant 0 : index
    %28 = vector.load %arg8[%c0_13, %c0_14] : memref<1x384xf32, #tpu.memory_space<vmem>>, vector<1x384xf32>
    %29 = vector.broadcast %28 : vector<1x384xf32> to vector<32x384xf32>
    %30 = arith.addf %27, %29 : vector<32x384xf32>
    %31 = vector.extract_strided_slice %30 {offsets = [0, 0], sizes = [32, 256], strides = [1, 1]} : vector<32x384xf32> to vector<32x256xf32>
    %32 = vector.shape_cast %31 : vector<32x256xf32> to vector<2x16x256xf32>
    %33 = vector.extract_strided_slice %30 {offsets = [0, 256], sizes = [32, 128], strides = [1, 1]} : vector<32x384xf32> to vector<32x128xf32>
    %34 = vector.shape_cast %33 : vector<32x128xf32> to vector<2x16x128xf32>
    "tpu.trace_start"() <{level = 10 : i32, message = "gnd,gmd->gnm"}> : () -> ()
    %cst_15 = arith.constant dense<0.000000e+00> : vector<2x16x16xf32>
    %35 = tpu.matmul %32, %32, %cst_15 {dimension_numbers = #tpu.dot_dimension_numbers<[2], [2], [1], [1], [0, 0, 0, 1, 1, 1], [0], [0]>} : vector<2x16x256xf32>, vector<2x16x256xf32>, vector<2x16x16xf32> -> vector<2x16x16xf32>
    "tpu.trace_stop"() : () -> ()
    %36 = arith.negf %35 : vector<2x16x16xf32>
    %37 = math.exp %36 : vector<2x16x16xf32>
    %cst_16 = arith.constant 1.000000e+00 : f32
    %38 = vector.broadcast %cst_16 : f32 to vector<2x16x16xf32>
    %39 = arith.addf %38, %37 : vector<2x16x16xf32>
    %40 = arith.divf %38, %39 : vector<2x16x16xf32>
    %cst_17 = arith.constant 1.000000e-01 : f32
    %41 = vector.broadcast %cst_17 : f32 to vector<2x16x16xf32>
    %42 = arith.maximumf %40, %41 : vector<2x16x16xf32>
    %c0_18 = arith.constant 0 : index
    %c0_19 = arith.constant 0 : index
    %43 = vector.load %arg2[%c0_18, %c0_19] : memref<16x16xf32, #tpu.memory_space<vmem>>, vector<16x16xf32>
    %44 = vector.shape_cast %43 : vector<16x16xf32> to vector<1x16x16xf32>
    %45 = vector.broadcast %44 : vector<1x16x16xf32> to vector<2x16x16xf32>
    %46 = arith.mulf %42, %45 : vector<2x16x16xf32>
    %c0_20 = arith.constant 0 : index
    %c0_21 = arith.constant 0 : index
    %47 = vector.load %arg3[%c0_20, %c0_21] : memref<16x16xf32, #tpu.memory_space<vmem>>, vector<16x16xf32>
    %48 = vector.shape_cast %47 : vector<16x16xf32> to vector<1x16x16xf32>
    %49 = vector.broadcast %48 : vector<1x16x16xf32> to vector<2x16x16xf32>
    %50 = arith.addf %46, %49 : vector<2x16x16xf32>
    %51 = vector.shape_cast %50 : vector<2x16x16xf32> to vector<32x16xf32>
    %c0_22 = arith.constant 0 : index
    %c0_23 = arith.constant 0 : index
    %52 = vector.load %arg4[%c0_22, %c0_23] : memref<16x128xf32, #tpu.memory_space<vmem>>, vector<16x128xf32>
    %cst_24 = arith.constant dense<0.000000e+00> : vector<32x128xf32>
    %53 = tpu.matmul %51, %52, %cst_24 {dimension_numbers = #tpu.dot_dimension_numbers<[1], [0], [0], [1], [0, 0, 1, 1], [], []>} : vector<32x16xf32>, vector<16x128xf32>, vector<32x128xf32> -> vector<32x128xf32>
    %54 = vector.shape_cast %53 : vector<32x128xf32> to vector<2x16x128xf32>
    %c0_25 = arith.constant 0 : index
    %c0_26 = arith.constant 0 : index
    %c0_27 = arith.constant 0 : index
    %55 = vector.load %arg10[%c0_25, %c0_26, %c0_27] : memref<2x16x128xf32, #tpu.memory_space<vmem>>, vector<2x16x128xf32>
    tpu.vector_store %arg10[%c0_25, %c0_26, %c0_27], %54 {strides = array<i32>} : memref<2x16x128xf32, #tpu.memory_space<vmem>>, vector<2x16x128xf32>,
    %cst_28 = arith.constant dense<0.000000e+00> : vector<2x16xf32>
    %56 = vector.multi_reduction <add>, %50, %cst_28 [2] : vector<2x16x16xf32> to vector<2x16xf32>
    %57 = vector.shape_cast %56 : vector<2x16xf32> to vector<2x16x1xf32>
    %58 = math.rsqrt %57 : vector<2x16x1xf32>
    %59 = vector.broadcast %58 : vector<2x16x1xf32> to vector<2x16x128xf32>
    %60 = arith.mulf %59, %34 : vector<2x16x128xf32>
    "tpu.trace_start"() <{level = 10 : i32, message = "gnm,gmo->gno"}> : () -> ()
    %cst_29 = arith.constant dense<0.000000e+00> : vector<2x16x128xf32>
    %61 = tpu.matmul %50, %60, %cst_29 {dimension_numbers = #tpu.dot_dimension_numbers<[2], [1], [1], [2], [0, 0, 0, 1, 1, 2], [0], [0]>} : vector<2x16x16xf32>, vector<2x16x128xf32>, vector<2x16x128xf32> -> vector<2x16x128xf32>
    "tpu.trace_stop"() : () -> ()
    %62 = vector.broadcast %58 : vector<2x16x1xf32> to vector<2x16x128xf32>
    %63 = arith.mulf %62, %61 : vector<2x16x128xf32>
    %cst_30 = arith.constant 0.000000e+00 : f32
    %64 = vector.broadcast %cst_30 : f32 to vector<2x16x128xf32>
    %65 = arith.cmpf oge, %63, %64 : vector<2x16x128xf32>
    %cst_31 = arith.constant 0.00999999977 : f32
    %66 = vector.broadcast %cst_31 : f32 to vector<2x16x128xf32>
    %67 = arith.mulf %66, %63 : vector<2x16x128xf32>
    %68 = arith.select %65, %63, %67 : vector<2x16x128xi1>, vector<2x16x128xf32>
    %c0_32 = arith.constant 0 : index
    %c0_33 = arith.constant 0 : index
    %c0_34 = arith.constant 0 : index
    %69 = vector.load %arg9[%c0_32, %c0_33, %c0_34] : memref<2x16x128xf32, #tpu.memory_space<vmem>>, vector<2x16x128xf32>
    tpu.vector_store %arg9[%c0_32, %c0_33, %c0_34], %68 {strides = array<i32>} : memref<2x16x128xf32, #tpu.memory_space<vmem>>, vector<2x16x128xf32>,
    return
  }
  func.func @transform_0(%arg0: i32) -> (i32, i32, i32) {
    %c0_i32 = arith.constant 0 : i32
    %c0_i32_0 = arith.constant 0 : i32
    %c0_i32_1 = arith.constant 0 : i32
    return %arg0, %c0_i32, %c0_i32_0 : i32, i32, i32
  }
  func.func @transform_1(%arg0: i32) -> (i32, i32) {
    %c0_i32 = arith.constant 0 : i32
    %c0_i32_0 = arith.constant 0 : i32
    %c0_i32_1 = arith.constant 0 : i32
    return %c0_i32, %c0_i32_0 : i32, i32
  }
  func.func @transform_2(%arg0: i32) -> (i32, i32) {
    %c0_i32 = arith.constant 0 : i32
    %c0_i32_0 = arith.constant 0 : i32
    %c0_i32_1 = arith.constant 0 : i32
    return %c0_i32, %c0_i32_0 : i32, i32
  }
  func.func @transform_3(%arg0: i32) -> (i32, i32) {
    %c0_i32 = arith.constant 0 : i32
    %c0_i32_0 = arith.constant 0 : i32
    %c0_i32_1 = arith.constant 0 : i32
    return %c0_i32, %c0_i32_0 : i32, i32
  }
  func.func @transform_4(%arg0: i32) -> (i32, i32) {
    %c0_i32 = arith.constant 0 : i32
    %c0_i32_0 = arith.constant 0 : i32
    %c0_i32_1 = arith.constant 0 : i32
    return %c0_i32, %c0_i32_0 : i32, i32
  }
  func.func @transform_5(%arg0: i32) -> (i32, i32) {
    %c0_i32 = arith.constant 0 : i32
    %c0_i32_0 = arith.constant 0 : i32
    %c0_i32_1 = arith.constant 0 : i32
    return %c0_i32, %c0_i32_0 : i32, i32
  }
  func.func @transform_6(%arg0: i32) -> (i32, i32) {
    %c0_i32 = arith.constant 0 : i32
    %c0_i32_0 = arith.constant 0 : i32
    %c0_i32_1 = arith.constant 0 : i32
    return %c0_i32, %c0_i32_0 : i32, i32
  }
  func.func @transform_7(%arg0: i32) -> (i32, i32) {
    %c0_i32 = arith.constant 0 : i32
    %c0_i32_0 = arith.constant 0 : i32
    %c0_i32_1 = arith.constant 0 : i32
    return %c0_i32, %c0_i32_0 : i32, i32
  }
  func.func @transform_8(%arg0: i32) -> (i32, i32, i32) {
    %c0_i32 = arith.constant 0 : i32
    %c0_i32_0 = arith.constant 0 : i32
    %c0_i32_1 = arith.constant 0 : i32
    return %arg0, %c0_i32, %c0_i32_0 : i32, i32, i32
  }
  func.func @transform_9(%arg0: i32) -> (i32, i32, i32) {
    %c0_i32 = arith.constant 0 : i32
    %c0_i32_0 = arith.constant 0 : i32
    %c0_i32_1 = arith.constant 0 : i32
    return %arg0, %c0_i32, %c0_i32_0 : i32, i32, i32
  }
}

</mosaic_0001>

<llo_original>
// kernel: tpu_custom_call.1
$region0: #{tpu_custom_call.1}
  #allocation0 [shape = 'u32[]', space=smem, size = 0x4, offset = 0x4, fixed_abs, tag = 'smem constant byte address 0x4 - core index']
  #allocation1 [shape = 'u32[144,128]{1,0:T(1,128)}', space=vmem, size = 0x12000, scoped, tag = 'internal scratch']
  %s0 = inlined_call_operand.hbm [shape: f32[4,16,32], index: 0, kind: input, shape index: {}]
  %s1 = inlined_call_operand.hbm [shape: f32[16,16], index: 1, kind: input, shape index: {}]
  %s2 = inlined_call_operand.hbm [shape: f32[16,16], index: 2, kind: input, shape index: {}]
  %s3 = inlined_call_operand.hbm [shape: f32[16,128], index: 3, kind: input, shape index: {}]
  %s4 = inlined_call_operand.vmem [shape: f32[1,32], index: 4, kind: input, shape index: {}]
  %s5 = inlined_call_operand.vmem [shape: f32[1,32], index: 5, kind: input, shape index: {}]
  %s6 = inlined_call_operand.hbm [shape: f32[32,384], index: 6, kind: input, shape index: {}]
  %s7 = inlined_call_operand.vmem [shape: f32[1,384], index: 7, kind: input, shape index: {}]
  %s8 = inlined_call_operand.hbm [shape: f32[4,16,128], index: 8, kind: output, shape index: {0}]
  %s9 = inlined_call_operand.hbm [shape: f32[4,16,128], index: 9, kind: output, shape index: {1}]
  %10 = xla_tuple %s8, %s9
  %s11 = sld [smem:[#allocation0]]
  $region93: #{tpu_custom_call.1} parent=0
    _
  %s13 = ssub.s32 1, %s11
  %s14 = scalar_select 0, %s13, %s11
  $region1: #{tpu_custom_call.1} parent=0
    #allocation2 [shape = 'u8[32768]{0}', space=vmem, size = 0x8000, scoped, tag = 'input window, operand 0']
    #allocation3 [shape = 's32[2]{0}', space=sflag, size = 0x8, scoped, tag = 'scoped memory for tpu_custom_call.1']
    #allocation4 [shape = 's32[2]{0}', space=sflag, size = 0x8, scoped, tag = 'scoped memory for tpu_custom_call.1']
    #allocation5 [shape = 'u8[8192]{0}', space=vmem, size = 0x2000, scoped, tag = 'input window, operand 1, single buffered']
    #allocation6 [shape = 's32[1]{0}', space=sflag, size = 0x4, scoped, tag = 'scoped memory for tpu_custom_call.1']
    #allocation7 [shape = 'u8[8192]{0}', space=vmem, size = 0x2000, scoped, tag = 'input window, operand 2, single buffered']
    #allocation8 [shape = 'u8[8192]{0}', space=vmem, size = 0x2000, scoped, tag = 'input window, operand 3, single buffered']
    #allocation9 [shape = 's32[1]{0}', space=sflag, size = 0x4, scoped, tag = 'scoped memory for tpu_custom_call.1']
    #allocation10 [shape = 'u8[49152]{0}', space=vmem, size = 0xc000, scoped, tag = 'input window, operand 6, single buffered']
    #allocation11 [shape = 'u8[32768]{0}', space=vmem, size = 0x8000, scoped, tag = 'output window, operand 0']
    #allocation12 [shape = 'u8[32768]{0}', space=vmem, size = 0x8000, scoped, tag = 'output window, operand 1']
    #allocation13 [shape = 's32[2]{0}', space=sflag, size = 0x8, scoped, tag = 'scoped memory for tpu_custom_call.1']
    %15 = vsyncpa [#allocation3], 0
    %s16 = scalar_lea.sflag [#allocation3], 1
    %17 = vsyncpa %s16, 0
    %18 = vsyncpa [#allocation6], 0
    %19 = vsyncpa [#allocation9], 0
    %20 = vsyncpa [#allocation4], 0
    %s21 = scalar_lea.sflag [#allocation4], 1
    %22 = vsyncpa %s21, 0
    %23 = vsyncpa [#allocation13], 0
    %s24 = scalar_lea.sflag [#allocation13], 1
    %25 = vsyncpa %s24, 0
    loop: start=0, step=1, limit=4
    $region2: #{tpu_custom_call.1} parent=1 // loop_pre_header
      _
    $region3: #{tpu_custom_call.1} parent=1 // loop_header
      %s27 = sphi 0, %s31
      %p28 = scmp.ge.s32.totalorder %s27, 4
      %s37 = sphi 0, %s39
      %s40 = sphi 0, %s37
      %s41 = sphi 0, %s40
      %s57 = sphi 0, %s41
      %s61 = sphi 0, %s61
      %s63 = sphi 0, %s61
      %s64 = sphi 0, %s63
      %s78 = sphi 0, %s64
      %s82 = sphi 0, %s82
      %s84 = sphi 0, %s82
      %s85 = sphi 0, %s84
      %s99 = sphi 0, %s85
      %s103 = sphi 0, %s103
      %s105 = sphi 0, %s103
      %s106 = sphi 0, %s105
      %s120 = sphi 0, %s106
      %s124 = sphi 0, %s124
      %s126 = sphi 0, %s124
      %s127 = sphi 0, %s126
      %s141 = sphi 0, %s127
      %s145 = sphi 0, %s145
      %s147 = sphi 0, %s145
      %s148 = sphi 0, %s147
      %s162 = sphi 0, %s148
      %s166 = sphi 0, %s166
      %s168 = sphi 0, %s166
      %s169 = sphi 0, %s168
      %s183 = sphi 0, %s169
      %s187 = sphi 0, %s187
      %s189 = sphi 0, %s187
      %s190 = sphi 0, %s189
      %s204 = sphi 0, %s190
      %s210 = sphi 0, %s212
      %s213 = sphi 0, %s210
      %s214 = sphi 0, %s213
      %s230 = sphi 0, %s214
      %s236 = sphi 0, %s238
      %s239 = sphi 0, %s236
      %s240 = sphi 0, %s239
      %s256 = sphi 0, %s240
    $region4: #{tpu_custom_call.1} parent=1 // loop_header_branch
      %30 = sbr.rel (%p28) target = $region8
    $region5: #{tpu_custom_call.1} parent=1 // loop_body
      %s32 = ssub.s32 %s27, 1
      %s33 = ssub.s32 %s27, 2
      %s34 = sadd.s32 %s27, 1
      %s35 = ssub.s32 %s27, %s34
      %p36 = scmp.eq.s32.totalorder %s35, 0
      %s38 = sadd.s32 %s37, 1
      %s39 = scalar_select %p36, %s37, %s38
      %p42 = pneg %p36
      %p43 = scmp.eq.s32.totalorder %s27, 1
      %p44 = por %p42, %p43
      %p45 = scmp.ne.s32.totalorder %s37, %s40
      %p46 = scmp.eq.s32.totalorder %s27, 0
      %p47 = por %p45, %p46
      %p48 = scmp.ne.s32.totalorder %s37, %s40
      %p49 = scmp.eq.s32.totalorder %s32, 1
      %p50 = por %p48, %p49
      %p51 = scmp.ne.s32.totalorder %s40, %s41
      %p52 = scmp.eq.s32.totalorder %s32, 0
      %p53 = por %p51, %p52
      %p54 = scmp.ne.s32.totalorder %s40, %s41
      %p55 = scmp.eq.s32.totalorder %s33, 1
      %p56 = por %p54, %p55
      %p58 = scmp.ne.s32.totalorder %s41, %s57
      %p59 = scmp.eq.s32.totalorder %s33, 0
      %p60 = por %p58, %p59
      %s62 = sadd.s32 %s61, 1
      %p65 = scmp.eq.s32.totalorder %s27, 1
      %p66 = scmp.ne.s32.totalorder %s61, %s63
      %p67 = scmp.eq.s32.totalorder %s27, 0
      %p68 = por %p66, %p67
      %p69 = scmp.ne.s32.totalorder %s61, %s63
      %p70 = scmp.eq.s32.totalorder %s32, 1
      %p71 = por %p69, %p70
      %p72 = scmp.ne.s32.totalorder %s63, %s64
      %p73 = scmp.eq.s32.totalorder %s32, 0
      %p74 = por %p72, %p73
      %p75 = scmp.ne.s32.totalorder %s63, %s64
      %p76 = scmp.eq.s32.totalorder %s33, 1
      %p77 = por %p75, %p76
      %p79 = scmp.ne.s32.totalorder %s64, %s78
      %p80 = scmp.eq.s32.totalorder %s33, 0
      %p81 = por %p79, %p80
      %s83 = sadd.s32 %s82, 1
      %p86 = scmp.eq.s32.totalorder %s27, 1
      %p87 = scmp.ne.s32.totalorder %s82, %s84
      %p88 = scmp.eq.s32.totalorder %s27, 0
      %p89 = por %p87, %p88
      %p90 = scmp.ne.s32.totalorder %s82, %s84
      %p91 = scmp.eq.s32.totalorder %s32, 1
      %p92 = por %p90, %p91
      %p93 = scmp.ne.s32.totalorder %s84, %s85
      %p94 = scmp.eq.s32.totalorder %s32, 0
      %p95 = por %p93, %p94
      %p96 = scmp.ne.s32.totalorder %s84, %s85
      %p97 = scmp.eq.s32.totalorder %s33, 1
      %p98 = por %p96, %p97
      %p100 = scmp.ne.s32.totalorder %s85, %s99
      %p101 = scmp.eq.s32.totalorder %s33, 0
      %p102 = por %p100, %p101
      %s104 = sadd.s32 %s103, 1
      %p107 = scmp.eq.s32.totalorder %s27, 1
      %p108 = scmp.ne.s32.totalorder %s103, %s105
      %p109 = scmp.eq.s32.totalorder %s27, 0
      %p110 = por %p108, %p109
      %p111 = scmp.ne.s32.totalorder %s103, %s105
      %p112 = scmp.eq.s32.totalorder %s32, 1
      %p113 = por %p111, %p112
      %p114 = scmp.ne.s32.totalorder %s105, %s106
      %p115 = scmp.eq.s32.totalorder %s32, 0
      %p116 = por %p114, %p115
      %p117 = scmp.ne.s32.totalorder %s105, %s106
      %p118 = scmp.eq.s32.totalorder %s33, 1
      %p119 = por %p117, %p118
      %p121 = scmp.ne.s32.totalorder %s106, %s120
      %p122 = scmp.eq.s32.totalorder %s33, 0
      %p123 = por %p121, %p122
      %s125 = sadd.s32 %s124, 1
      %p128 = scmp.eq.s32.totalorder %s27, 1
      %p129 = scmp.ne.s32.totalorder %s124, %s126
      %p130 = scmp.eq.s32.totalorder %s27, 0
      %p131 = por %p129, %p130
      %p132 = scmp.ne.s32.totalorder %s124, %s126
      %p133 = scmp.eq.s32.totalorder %s32, 1
      %p134 = por %p132, %p133
      %p135 = scmp.ne.s32.totalorder %s126, %s127
      %p136 = scmp.eq.s32.totalorder %s32, 0
      %p137 = por %p135, %p136
      %p138 = scmp.ne.s32.totalorder %s126, %s127
      %p139 = scmp.eq.s32.totalorder %s33, 1
      %p140 = por %p138, %p139
      %p142 = scmp.ne.s32.totalorder %s127, %s141
      %p143 = scmp.eq.s32.totalorder %s33, 0
      %p144 = por %p142, %p143
      %s146 = sadd.s32 %s145, 1
      %p149 = scmp.eq.s32.totalorder %s27, 1
      %p150 = scmp.ne.s32.totalorder %s145, %s147
      %p151 = scmp.eq.s32.totalorder %s27, 0
      %p152 = por %p150, %p151
      %p153 = scmp.ne.s32.totalorder %s145, %s147
      %p154 = scmp.eq.s32.totalorder %s32, 1
      %p155 = por %p153, %p154
      %p156 = scmp.ne.s32.totalorder %s147, %s148
      %p157 = scmp.eq.s32.totalorder %s32, 0
      %p158 = por %p156, %p157
      %p159 = scmp.ne.s32.totalorder %s147, %s148
      %p160 = scmp.eq.s32.totalorder %s33, 1
      %p161 = por %p159, %p160
      %p163 = scmp.ne.s32.totalorder %s148, %s162
      %p164 = scmp.eq.s32.totalorder %s33, 0
      %p165 = por %p163, %p164
      %s167 = sadd.s32 %s166, 1
      %p170 = scmp.eq.s32.totalorder %s27, 1
      %p171 = scmp.ne.s32.totalorder %s166, %s168
      %p172 = scmp.eq.s32.totalorder %s27, 0
      %p173 = por %p171, %p172
      %p174 = scmp.ne.s32.totalorder %s166, %s168
      %p175 = scmp.eq.s32.totalorder %s32, 1
      %p176 = por %p174, %p175
      %p177 = scmp.ne.s32.totalorder %s168, %s169
      %p178 = scmp.eq.s32.totalorder %s32, 0
      %p179 = por %p177, %p178
      %p180 = scmp.ne.s32.totalorder %s168, %s169
      %p181 = scmp.eq.s32.totalorder %s33, 1
      %p182 = por %p180, %p181
      %p184 = scmp.ne.s32.totalorder %s169, %s183
      %p185 = scmp.eq.s32.totalorder %s33, 0
      %p186 = por %p184, %p185
      %s188 = sadd.s32 %s187, 1
      %p191 = scmp.eq.s32.totalorder %s27, 1
      %p192 = scmp.ne.s32.totalorder %s187, %s189
      %p193 = scmp.eq.s32.totalorder %s27, 0
      %p194 = por %p192, %p193
      %p195 = scmp.ne.s32.totalorder %s187, %s189
      %p196 = scmp.eq.s32.totalorder %s32, 1
      %p197 = por %p195, %p196
      %p198 = scmp.ne.s32.totalorder %s189, %s190
      %p199 = scmp.eq.s32.totalorder %s32, 0
      %p200 = por %p198, %p199
      %p201 = scmp.ne.s32.totalorder %s189, %s190
      %p202 = scmp.eq.s32.totalorder %s33, 1
      %p203 = por %p201, %p202
      %p205 = scmp.ne.s32.totalorder %s190, %s204
      %p206 = scmp.eq.s32.totalorder %s33, 0
      %p207 = por %p205, %p206
      %s208 = ssub.s32 %s27, %s34
      %p209 = scmp.eq.s32.totalorder %s208, 0
      %s211 = sadd.s32 %s210, 1
      %s212 = scalar_select %p209, %s210, %s211
      %p215 = pneg %p209
      %p216 = scmp.eq.s32.totalorder %s27, 1
      %p217 = por %p215, %p216
      %p218 = scmp.ne.s32.totalorder %s210, %s213
      %p219 = scmp.eq.s32.totalorder %s27, 0
      %p220 = por %p218, %p219
      %p221 = scmp.ne.s32.totalorder %s210, %s213
      %p222 = scmp.eq.s32.totalorder %s32, 1
      %p223 = por %p221, %p222
      %p224 = scmp.ne.s32.totalorder %s213, %s214
      %p225 = scmp.eq.s32.totalorder %s32, 0
      %p226 = por %p224, %p225
      %p227 = scmp.ne.s32.totalorder %s213, %s214
      %p228 = scmp.eq.s32.totalorder %s33, 1
      %p229 = por %p227, %p228
      %p231 = scmp.ne.s32.totalorder %s214, %s230
      %p232 = scmp.eq.s32.totalorder %s33, 0
      %p233 = por %p231, %p232
      %s234 = ssub.s32 %s27, %s34
      %p235 = scmp.eq.s32.totalorder %s234, 0
      %s237 = sadd.s32 %s236, 1
      %s238 = scalar_select %p235, %s236, %s237
      %p241 = pneg %p235
      %p242 = scmp.eq.s32.totalorder %s27, 1
      %p243 = por %p241, %p242
      %p244 = scmp.ne.s32.totalorder %s236, %s239
      %p245 = scmp.eq.s32.totalorder %s27, 0
      %p246 = por %p244, %p245
      %p247 = scmp.ne.s32.totalorder %s236, %s239
      %p248 = scmp.eq.s32.totalorder %s32, 1
      %p249 = por %p247, %p248
      %p250 = scmp.ne.s32.totalorder %s239, %s240
      %p251 = scmp.eq.s32.totalorder %s32, 0
      %p252 = por %p250, %p251
      %p253 = scmp.ne.s32.totalorder %s239, %s240
      %p254 = scmp.eq.s32.totalorder %s33, 1
      %p255 = por %p253, %p254
      %p257 = scmp.ne.s32.totalorder %s240, %s256
      %p258 = scmp.eq.s32.totalorder %s33, 0
      %p259 = por %p257, %p258
      %p260 = scmp.le.s32.totalorder 1, %s27
      %p261 = scmp.lt.s32.totalorder %s27, 3
      %p262 = pnand %p260, %p261
      %p263 = pneg %p262
      // Predicated region
      $region9: #{tpu_custom_call.1} parent=5 // pred_check
        _
      $region10: #{tpu_custom_call.1} parent=5 // pred_check_branch
        %265 = sbr.rel (%p262) target = $region12
      $region11: #{tpu_custom_call.1} parent=5 // pred_region
        %s266 = ssub.s32 %s27, 1
        // Predicated region
        $region13: #{tpu_custom_call.1} parent=11 // pred_check
          %p267 = pneg %p74
        $region14: #{tpu_custom_call.1} parent=11 // pred_check_branch
          %269 = sbr.rel (%p267) target = $region16
        $region15: #{tpu_custom_call.1} parent=11 // pred_region
          %s271 = ssub.s32 256, 256
          %272 = vsyncadd [#allocation6], %s271
          %s273 = sshll.u32 [#allocation5], 4
          %s274 = int_to_ptr.vmem [resolvable:$true] %s273
          %279 = dma.hbm_to_vmem [thread:$0]  %s1, 256, %s274, [#allocation6], 128, 128, 8
        $region16: #{tpu_custom_call.1} parent=11 // pred_fallthru
          _
        // Predicated region
        $region17: #{tpu_custom_call.1} parent=11 // pred_check
          %p280 = pneg %p95
        $region18: #{tpu_custom_call.1} parent=11 // pred_check_branch
          %282 = sbr.rel (%p280) target = $region20
        $region19: #{tpu_custom_call.1} parent=11 // pred_region
          %s284 = ssub.s32 256, 256
          %285 = vsyncadd [#allocation6], %s284
          %s286 = sshll.u32 [#allocation7], 4
          %s287 = int_to_ptr.vmem [resolvable:$true] %s286
          %292 = dma.hbm_to_vmem [thread:$0]  %s2, 256, %s287, [#allocation6], 128, 128, 8
        $region20: #{tpu_custom_call.1} parent=11 // pred_fallthru
          _
        // Predicated region
        $region21: #{tpu_custom_call.1} parent=11 // pred_check
          %p293 = pneg %p116
        $region22: #{tpu_custom_call.1} parent=11 // pred_check_branch
          %295 = sbr.rel (%p293) target = $region24
        $region23: #{tpu_custom_call.1} parent=11 // pred_region
          %s297 = ssub.s32 256, 256
          %298 = vsyncadd [#allocation9], %s297
          %s299 = sshll.u32 [#allocation8], 4
          %s300 = int_to_ptr.vmem [resolvable:$true] %s299
          %305 = dma.hbm_to_vmem [thread:$0]  %s3, 256, %s300, [#allocation9], 128, 128, 8
        $region24: #{tpu_custom_call.1} parent=11 // pred_fallthru
          _
        // Predicated region
        $region25: #{tpu_custom_call.1} parent=11 // pred_check
          %p306 = pneg %p137
        $region26: #{tpu_custom_call.1} parent=11 // pred_check_branch
          %308 = sbr.rel (%p306) target = $region28
        $region27: #{tpu_custom_call.1} parent=11 // pred_region
          _
        $region28: #{tpu_custom_call.1} parent=11 // pred_fallthru
          _
        // Predicated region
        $region29: #{tpu_custom_call.1} parent=11 // pred_check
          %p309 = pneg %p158
        $region30: #{tpu_custom_call.1} parent=11 // pred_check_branch
          %311 = sbr.rel (%p309) target = $region32
        $region31: #{tpu_custom_call.1} parent=11 // pred_region
          _
        $region32: #{tpu_custom_call.1} parent=11 // pred_fallthru
          _
        // Predicated region
        $region33: #{tpu_custom_call.1} parent=11 // pred_check
          %p312 = pneg %p179
        $region34: #{tpu_custom_call.1} parent=11 // pred_check_branch
          %314 = sbr.rel (%p312) target = $region36
        $region35: #{tpu_custom_call.1} parent=11 // pred_region
          %s316 = ssub.s32 1536, 1536
          %317 = vsyncadd [#allocation9], %s316
          %s318 = sshll.u32 [#allocation10], 4
          %s319 = int_to_ptr.vmem [resolvable:$true] %s318
          %324 = dma.hbm_to_vmem [thread:$0]  %s6, 1536, %s319, [#allocation9], 384, 384, 24
        $region36: #{tpu_custom_call.1} parent=11 // pred_fallthru
          _
        // Predicated region
        $region37: #{tpu_custom_call.1} parent=11 // pred_check
          %p325 = pneg %p200
        $region38: #{tpu_custom_call.1} parent=11 // pred_check_branch
          %327 = sbr.rel (%p325) target = $region40
        $region39: #{tpu_custom_call.1} parent=11 // pred_region
          _
        $region40: #{tpu_custom_call.1} parent=11 // pred_fallthru
          _
      $region12: #{tpu_custom_call.1} parent=5 // pred_fallthru
        _
      %p328 = scmp.lt.s32.totalorder %s27, 2
      // Predicated region
      $region41: #{tpu_custom_call.1} parent=5 // pred_check
        %p329 = pneg %p328
      $region42: #{tpu_custom_call.1} parent=5 // pred_check_branch
        %331 = sbr.rel (%p329) target = $region44
      $region43: #{tpu_custom_call.1} parent=5 // pred_region
        // Predicated region
        $region45: #{tpu_custom_call.1} parent=43 // pred_check
          %p332 = pneg %p47
        $region46: #{tpu_custom_call.1} parent=43 // pred_check_branch
          %334 = sbr.rel (%p332) target = $region48
        $region47: #{tpu_custom_call.1} parent=43 // pred_region
          %s335 = sand.u32 %s37, 1
          %s336 = scalar_lea.sflag [#allocation3], %s335
          %s337 = sand.u32 %s37, 1
          %s338 = smul.addr %s337, 32
          %s339 = scalar_lea.vmem [#allocation2], %s338
          %s340 = smul.u32 2, %s27
          %s342 = ssub.s32 512, 512
          %343 = vsyncadd %s336, %s342
          %s344 = smul.addr %s340, 2
          %s345 = smul.addr %s344, 128
          %s346 = scalar_lea.hbm %s0, %s345
          %s347 = sshll.u32 %s339, 4
          %s348 = int_to_ptr.vmem [resolvable:$true] %s347
          %353 = dma.hbm_to_vmem [thread:$0]  %s346, 512, %s348, %s336, 128, 128, 8
        $region48: #{tpu_custom_call.1} parent=43 // pred_fallthru
          _
      $region44: #{tpu_custom_call.1} parent=5 // pred_fallthru
        _
      %p354 = scmp.le.s32.totalorder 1, %s27
      %p355 = scmp.lt.s32.totalorder %s27, 3
      %p356 = pnand %p354, %p355
      %p357 = pneg %p356
      // Predicated region
      $region49: #{tpu_custom_call.1} parent=5 // pred_check
        _
      $region50: #{tpu_custom_call.1} parent=5 // pred_check_branch
        %359 = sbr.rel (%p356) target = $region52
      $region51: #{tpu_custom_call.1} parent=5 // pred_region
        %s360 = ssub.s32 %s27, 1
        %s361 = sand.u32 %s40, 1
        %s362 = scalar_lea.sflag [#allocation3], %s361
        %s363 = sand.u32 %s40, 1
        %s364 = smul.addr %s363, 32
        %s365 = scalar_lea.vmem [#allocation2], %s364
        // Predicated region
        $region53: #{tpu_custom_call.1} parent=51 // pred_check
          %p366 = pneg %p53
        $region54: #{tpu_custom_call.1} parent=51 // pred_check_branch
          %368 = sbr.rel (%p366) target = $region56
        $region55: #{tpu_custom_call.1} parent=51 // pred_region
          %369 = dma.done %s362, 512
        $region56: #{tpu_custom_call.1} parent=51 // pred_fallthru
          _
        // Predicated region
        $region57: #{tpu_custom_call.1} parent=51 // pred_check
          %p370 = pneg %p74
        $region58: #{tpu_custom_call.1} parent=51 // pred_check_branch
          %372 = sbr.rel (%p370) target = $region60
        $region59: #{tpu_custom_call.1} parent=51 // pred_region
          %373 = dma.done [#allocation6], 256
        $region60: #{tpu_custom_call.1} parent=51 // pred_fallthru
          _
        // Predicated region
        $region61: #{tpu_custom_call.1} parent=51 // pred_check
          %p374 = pneg %p95
        $region62: #{tpu_custom_call.1} parent=51 // pred_check_branch
          %376 = sbr.rel (%p374) target = $region64
        $region63: #{tpu_custom_call.1} parent=51 // pred_region
          %377 = dma.done [#allocation6], 256
        $region64: #{tpu_custom_call.1} parent=51 // pred_fallthru
          _
        // Predicated region
        $region65: #{tpu_custom_call.1} parent=51 // pred_check
          %p378 = pneg %p116
        $region66: #{tpu_custom_call.1} parent=51 // pred_check_branch
          %380 = sbr.rel (%p378) target = $region68
        $region67: #{tpu_custom_call.1} parent=51 // pred_region
          %381 = dma.done [#allocation9], 256
        $region68: #{tpu_custom_call.1} parent=51 // pred_fallthru
          _
        // Predicated region
        $region69: #{tpu_custom_call.1} parent=51 // pred_check
          %p382 = pneg %p179
        $region70: #{tpu_custom_call.1} parent=51 // pred_check_branch
          %384 = sbr.rel (%p382) target = $region72
        $region71: #{tpu_custom_call.1} parent=51 // pred_region
          %385 = dma.done [#allocation9], 1536
        $region72: #{tpu_custom_call.1} parent=51 // pred_fallthru
          _
        %s386 = sand.u32 %s40, 1
        %s387 = scalar_lea.sflag [#allocation3], %s386
        %s388 = sand.u32 %s40, 1
        %s389 = smul.addr %s388, 32
        %s390 = scalar_lea.vmem [#allocation2], %s389
        %p391 = pneg %p53
        %p392 = pneg %p50
        %p393 = pneg %p74
        %p394 = pneg %p71
        %p395 = pneg %p95
        %p396 = pneg %p92
        %p397 = pneg %p116
        %p398 = pneg %p113
        %p399 = pneg %p137
        %p400 = pneg %p134
        %p401 = pneg %p158
        %p402 = pneg %p155
        %p403 = pneg %p179
        %p404 = pneg %p176
        %p405 = pneg %p200
        %p406 = pneg %p197
        %p407 = pneg %p226
        %p408 = pneg %p223
        %s409 = sand.u32 %s213, 1
        %s410 = scalar_lea.sflag [#allocation4], %s409
        %s411 = sand.u32 %s213, 1
        %s412 = smul.addr %s411, 32
        %s413 = scalar_lea.vmem [#allocation11], %s412
        %p414 = pneg %p252
        %p415 = pneg %p249
        %s416 = sand.u32 %s239, 1
        %s417 = scalar_lea.sflag [#allocation13], %s416
        %s418 = sand.u32 %s239, 1
        %s419 = smul.addr %s418, 32
        %s420 = scalar_lea.vmem [#allocation12], %s419
        %s421 = smul.u32 2, %s32
        %s422 = smul.u32 2, %s32
        %s423 = smul.u32 2, %s32
        %v424 = vld [vmem:[%s365] sm:$0xff]
        %v425 = vld [vmem:[%s365 + $0x8] sm:$0xff]
        %v426 = vld [vmem:[%s365 + $0x10] sm:$0xff]
        %v427 = vld [vmem:[%s365 + $0x18] sm:$0xff]
        %vm428 = vcmask 261120
        %v429 = vsel %vm428, %v424, 0.0
        %v430 = vsel %vm428, %v425, 0.0
        %v431 = vadd.f32 %v429, %v430
        %v432 = vrot.slane %v431, 4
        %v433 = vadd.f32 %v431, %v432
        %v434 = vrot.slane %v433, 2
        %v435 = vadd.f32 %v433, %v434
        %v436 = vrot.slane %v435, 1
        %v437 = vadd.f32 %v435, %v436
        %v438 = vsel %vm428, %v426, 0.0
        %v439 = vsel %vm428, %v427, 0.0
        %v440 = vadd.f32 %v438, %v439
        %v441 = vrot.slane %v440, 4
        %v442 = vadd.f32 %v440, %v441
        %v443 = vrot.slane %v442, 2
        %v444 = vadd.f32 %v442, %v443
        %v445 = vrot.slane %v444, 1
        %v446 = vadd.f32 %v444, %v445
        %v447 = vrcp.pop 16.0
        %v448 = vmul.f32 %v437, %v447
        %v449 = vmul.f32 %v446, %v447
        %v450 = vsub.f32 %v424, %v448
        %v451 = vsub.f32 %v425, %v448
        %v452 = vsub.f32 %v426, %v449
        %v453 = vsub.f32 %v427, %v449
        %v454 = vmul.f32 %v450, %v450
        %v455 = vmul.f32 %v451, %v451
        %v456 = vmul.f32 %v452, %v452
        %v457 = vmul.f32 %v453, %v453
        %v458 = vsel %vm428, %v454, 0.0
        %v459 = vsel %vm428, %v455, 0.0
        %v460 = vadd.f32 %v458, %v459
        %v461 = vrot.slane %v460, 4
        %v462 = vadd.f32 %v460, %v461
        %v463 = vrot.slane %v462, 2
        %v464 = vadd.f32 %v462, %v463
        %v465 = vrot.slane %v464, 1
        %v466 = vadd.f32 %v464, %v465
        %v467 = vsel %vm428, %v456, 0.0
        %v468 = vsel %vm428, %v457, 0.0
        %v469 = vadd.f32 %v467, %v468
        %v470 = vrot.slane %v469, 4
        %v471 = vadd.f32 %v469, %v470
        %v472 = vrot.slane %v471, 2
        %v473 = vadd.f32 %v471, %v472
        %v474 = vrot.slane %v473, 1
        %v475 = vadd.f32 %v473, %v474
        %v476 = vmul.f32 %v466, %v447
        %v477 = vmul.f32 %v475, %v447
        %v478 = vld [vmem:[%s4] sm:$0x1]
        %v479 = vadd.f32 %v476, 1e-05
        %v480 = vadd.f32 %v477, 1e-05
        %v481 = vrsqrt.pop %v479
        %v482 = vrsqrt.pop %v480
        %v483 = vmul.f32 %v478, %v481
        %v484 = vmul.f32 %v478, %v482
        %v487 = vlaneseq
        %v488 = vshrl.u32 %v487, 7
        %v489 = vsub.s32 0, %v488
        %v490 = vrot.slane %v483, %v489
        %v491 = vlaneseq
        %v492 = vshrl.u32 %v491, 7
        %v493 = vsub.s32 0, %v492
        %v494 = vrot.slane %v484, %v493
        %v497 = vmul.f32 %v450, %v490
        %v498 = vmul.f32 %v451, %v490
        %v499 = vmul.f32 %v452, %v494
        %v500 = vmul.f32 %v453, %v494
        %v501 = vld [vmem:[%s5] sm:$0x1]
        %v503 = vlaneseq
        %v504 = vshrl.u32 %v503, 7
        %v505 = vsub.s32 0, %v504
        %v506 = vrot.slane %v501, %v505
        %v508 = vadd.f32 %v497, %v506
        %v509 = vadd.f32 %v498, %v506
        %v510 = vadd.f32 %v499, %v506
        %v511 = vadd.f32 %v500, %v506
        %v512 = vld [vmem:[#allocation10] sm:$0xff]
        %v513 = vld [vmem:[#allocation10 + $0x8] sm:$0xff]
        %v514 = vld [vmem:[#allocation10 + $0x10] sm:$0xff]
        %v515 = vld [vmem:[#allocation10 + $0x18] sm:$0xff]
        %v516 = vld [vmem:[#allocation10 + $0x20] sm:$0xff]
        %v517 = vld [vmem:[#allocation10 + $0x28] sm:$0xff]
        %v518 = vld [vmem:[#allocation10 + $0x30] sm:$0xff]
        %v519 = vld [vmem:[#allocation10 + $0x38] sm:$0xff]
        %v520 = vld [vmem:[#allocation10 + $0x40] sm:$0xff]
        %v521 = vld [vmem:[#allocation10 + $0x48] sm:$0xff]
        %v522 = vld [vmem:[#allocation10 + $0x50] sm:$0xff]
        %v523 = vld [vmem:[#allocation10 + $0x58] sm:$0xff]
        %v524 = vld [vmem:[%s7] sm:$0x7]
        %v526 = vlaneseq
        %v527 = vshrl.u32 %v526, 7
        %v528 = vsub.s32 0, %v527
        %v529 = vrot.slane %v524, %v528
        %v530 = vlaneseq
        %v531 = vshrl.u32 %v530, 7
        %v532 = vsub.s32 1, %v531
        %v533 = vrot.slane %v524, %v532
        %v534 = vlaneseq
        %v535 = vshrl.u32 %v534, 7
        %v536 = vsub.s32 2, %v535
        %v537 = vrot.slane %v524, %v536
        %v542 = vsel %vm428, %v508, 0
        %v545 = vsel %vm428, %v509, 0
        %v548 = vsel %vm428, %v510, 0
        %v551 = vsel %vm428, %v511, 0
        %553 = vmatprep.subr.mxu0 %v513
        %554 = vmatpush1.msra.mxu0 %v512
        %555 = vmatprep.subr.mxu0 %v516
        %556 = vmatpush1.msra.mxu0 %v515
        %557 = vmatprep.subr.mxu0 %v519
        %558 = vmatpush1.msra.mxu0 %v518
        %559 = vmatprep.subr.mxu0 %v522
        %560 = vmatpush1.msra.mxu0 %v521
        %561 = vmatprep.subr.mxu0 0.0
        %562 = vmatpush1.msra.mxu0 0.0
        %563 = vmatprep.subr.mxu0 0.0
        %564 = vmatpush1.msra.mxu0 0.0
        %565 = vmatprep.subr.mxu0 0.0
        %566 = vmatpush1.msra.mxu0 0.0
        %567 = vmatprep.subr.mxu0 0.0
        %568 = vmatpush1.msra.mxu0 0.0
        %569 = vmatprep.subr.mxu0 0.0
        %570 = vmatpush1.msra.mxu0 0.0
        %571 = vmatprep.subr.mxu0 0.0
        %572 = vmatpush1.msra.mxu0 0.0
        %573 = vmatprep.subr.mxu0 0.0
        %574 = vmatpush1.msra.mxu0 0.0
        %575 = vmatprep.subr.mxu0 0.0
        %576 = vmatpush1.msra.mxu0 0.0
        %577 = vmatprep.subr.mxu0 0.0
        %578 = vmatpush1.msra.mxu0 0.0
        %579 = vmatprep.subr.mxu0 0.0
        %580 = vmatpush1.msra.mxu0 0.0
        %581 = vmatprep.subr.mxu0 0.0
        %582 = vmatpush1.msra.mxu0 0.0
        %583 = vmatprep.subr.mxu0 0.0
        %584 = vmatpush1.msra.mxu0 0.0
        %585 = vmatprep.subr.mxu0 0.0
        %586 = vmatpush1.msra.mxu0 0.0
        %587 = vmatprep.subr.mxu0 0.0
        %588 = vmatpush1.msra.mxu0 0.0
        %589 = vmatprep.subr.mxu0 0.0
        %590 = vmatpush1.msra.mxu0 0.0
        %591 = vmatprep.subr.mxu0 0.0
        %592 = vmatpush1.msra.mxu0 0.0
        %593 = vmatprep.subr.mxu0 0.0
        %594 = vmatpush1.msra.mxu0 0.0
        %595 = vmatprep.subr.mxu0 0.0
        %596 = vmatpush1.msra.mxu0 0.0
        %597 = vmatprep.subr.mxu0 0.0
        %598 = vmatpush1.msra.mxu0 0.0
        %599 = vmatprep.subr.mxu0 0.0
        %600 = vmatpush1.msra.mxu0 0.0
        %601 = vmatprep.subr.mxu0 0.0
        %602 = vmatpush1.msra.mxu0 0.0
        %603 = vmatprep.subr.mxu0 0.0
        %604 = vmatpush1.msra.mxu0 0.0
        %605 = vmatprep.subr.mxu0 0.0
        %606 = vmatpush1.msra.mxu0 0.0
        %607 = vmatprep.subr.mxu0 0.0
        %608 = vmatpush1.msra.mxu0 0.0
        %609 = vmatprep.subr.mxu0 0.0
        %610 = vmatpush1.msra.mxu0 0.0
        %611 = vmatprep.subr.mxu0 0.0
        %612 = vmatpush1.msra.mxu0 0.0
        %613 = vmatprep.subr.mxu0 0.0
        %614 = vmatpush1.msra.mxu0 0.0
        %615 = vmatprep.subr.mxu0 0.0
        %616 = vmatpush1.msra.mxu0 0.0
        %617 = vmatprep.mubr.f32.mxu0 0.0
        %618 = vmatmul.mubr.f32.gmra.mrb[0].mxu0 %v542
        %v619 = vpop.f32.mrb[0].mxu0
        %v620 = vadd.f32 %v529, %v619
        %v621 = vpop.f32.mrb[0].mxu0
        %v622 = vadd.f32 %v533, %v621
        %623 = vmatprep.mubr.f32.mxu0 0.0
        %624 = vmatmul.mubr.f32.gmra.mrb[0].mxu0 %v545
        %v625 = vpop.f32.mrb[0].mxu0
        %v626 = vadd.f32 %v529, %v625
        %v627 = vpop.f32.mrb[0].mxu0
        %v628 = vadd.f32 %v533, %v627
        %629 = vmatprep.mubr.f32.mxu0 0.0
        %630 = vmatmul.mubr.f32.gmra.mrb[0].mxu0 %v548
        %v631 = vpop.f32.mrb[0].mxu0
        %v632 = vadd.f32 %v529, %v631
        %v633 = vpop.f32.mrb[0].mxu0
        %v634 = vadd.f32 %v533, %v633
        %635 = vmatprep.mubr.f32.mxu0 0.0
        %636 = vmatmul.mubr.f32.gmra.mrb[0].mxu0 %v551
        %v637 = vpop.f32.mrb[0].mxu0
        %v638 = vadd.f32 %v529, %v637
        %v639 = vpop.f32.mrb[0].mxu0
        %v640 = vadd.f32 %v533, %v639
        %641 = vdwg.mxu0
        %642 = vmatprep.subr.mxu0 0.0
        %643 = vmatpush1.msra.mxu0 %v514
        %644 = vmatprep.subr.mxu0 0.0
        %645 = vmatpush1.msra.mxu0 %v517
        %646 = vmatprep.subr.mxu0 0.0
        %647 = vmatpush1.msra.mxu0 %v520
        %648 = vmatprep.subr.mxu0 0.0
        %649 = vmatpush1.msra.mxu0 %v523
        %650 = vmatprep.subr.mxu0 0.0
        %651 = vmatpush1.msra.mxu0 0.0
        %652 = vmatprep.subr.mxu0 0.0
        %653 = vmatpush1.msra.mxu0 0.0
        %654 = vmatprep.subr.mxu0 0.0
        %655 = vmatpush1.msra.mxu0 0.0
        %656 = vmatprep.subr.mxu0 0.0
        %657 = vmatpush1.msra.mxu0 0.0
        %658 = vmatprep.subr.mxu0 0.0
        %659 = vmatpush1.msra.mxu0 0.0
        %660 = vmatprep.subr.mxu0 0.0
        %661 = vmatpush1.msra.mxu0 0.0
        %662 = vmatprep.subr.mxu0 0.0
        %663 = vmatpush1.msra.mxu0 0.0
        %664 = vmatprep.subr.mxu0 0.0
        %665 = vmatpush1.msra.mxu0 0.0
        %666 = vmatprep.subr.mxu0 0.0
        %667 = vmatpush1.msra.mxu0 0.0
        %668 = vmatprep.subr.mxu0 0.0
        %669 = vmatpush1.msra.mxu0 0.0
        %670 = vmatprep.subr.mxu0 0.0
        %671 = vmatpush1.msra.mxu0 0.0
        %672 = vmatprep.subr.mxu0 0.0
        %673 = vmatpush1.msra.mxu0 0.0
        %674 = vmatprep.subr.mxu0 0.0
        %675 = vmatpush1.msra.mxu0 0.0
        %676 = vmatprep.subr.mxu0 0.0
        %677 = vmatpush1.msra.mxu0 0.0
        %678 = vmatprep.subr.mxu0 0.0
        %679 = vmatpush1.msra.mxu0 0.0
        %680 = vmatprep.subr.mxu0 0.0
        %681 = vmatpush1.msra.mxu0 0.0
        %682 = vmatprep.subr.mxu0 0.0
        %683 = vmatpush1.msra.mxu0 0.0
        %684 = vmatprep.subr.mxu0 0.0
        %685 = vmatpush1.msra.mxu0 0.0
        %686 = vmatprep.subr.mxu0 0.0
        %687 = vmatpush1.msra.mxu0 0.0
        %688 = vmatprep.subr.mxu0 0.0
        %689 = vmatpush1.msra.mxu0 0.0
        %690 = vmatprep.subr.mxu0 0.0
        %691 = vmatpush1.msra.mxu0 0.0
        %692 = vmatprep.subr.mxu0 0.0
        %693 = vmatpush1.msra.mxu0 0.0
        %694 = vmatprep.subr.mxu0 0.0
        %695 = vmatpush1.msra.mxu0 0.0
        %696 = vmatprep.subr.mxu0 0.0
        %697 = vmatpush1.msra.mxu0 0.0
        %698 = vmatprep.subr.mxu0 0.0
        %699 = vmatpush1.msra.mxu0 0.0
        %700 = vmatprep.subr.mxu0 0.0
        %701 = vmatpush1.msra.mxu0 0.0
        %702 = vmatprep.subr.mxu0 0.0
        %703 = vmatpush1.msra.mxu0 0.0
        %704 = vmatprep.subr.mxu0 0.0
        %705 = vmatpush1.msra.mxu0 0.0
        %706 = vmatprep.mubr.f32.mxu0 0.0
        %707 = vmatmul.mubr.f32.gmra.mrb[0].mxu0 %v542
        %v708 = vpop.f32.mrb[0].mxu0
        %v709 = vadd.f32 %v537, %v708
        %v710 = vpop.f32.mrb[0].mxu0
        %711 = vmatprep.mubr.f32.mxu0 0.0
        %712 = vmatmul.mubr.f32.gmra.mrb[0].mxu0 %v545
        %v713 = vpop.f32.mrb[0].mxu0
        %v714 = vadd.f32 %v537, %v713
        %v715 = vpop.f32.mrb[0].mxu0
        %716 = vmatprep.mubr.f32.mxu0 0.0
        %717 = vmatmul.mubr.f32.gmra.mrb[0].mxu0 %v548
        %v718 = vpop.f32.mrb[0].mxu0
        %v719 = vadd.f32 %v537, %v718
        %v720 = vpop.f32.mrb[0].mxu0
        %721 = vmatprep.mubr.f32.mxu0 0.0
        %722 = vmatmul.mubr.f32.gmra.mrb[0].mxu0 %v551
        %v723 = vpop.f32.mrb[0].mxu0
        %v724 = vadd.f32 %v537, %v723
        %v725 = vpop.f32.mrb[0].mxu0
        %726 = vdwg.mxu0
        %727 = vmatprep.subr.mxu0 %v622
        %728 = vmatpush1.xpose.msra.mxu0 %v620
        %729 = vmatprep.subr.mxu0 %v628
        %730 = vmatpush1.xpose.msra.mxu0 %v626
        %731 = vmatprep.subr.mxu0 0.0
        %732 = vmatpush1.xpose.msra.mxu0 0.0
        %733 = vmatprep.subr.mxu0 0.0
        %734 = vmatpush1.xpose.msra.mxu0 0.0
        %735 = vmatprep.subr.mxu0 0.0
        %736 = vmatpush1.xpose.msra.mxu0 0.0
        %737 = vmatprep.subr.mxu0 0.0
        %738 = vmatpush1.xpose.msra.mxu0 0.0
        %739 = vmatprep.subr.mxu0 0.0
        %740 = vmatpush1.xpose.msra.mxu0 0.0
        %741 = vmatprep.subr.mxu0 0.0
        %742 = vmatpush1.xpose.msra.mxu0 0.0
        %743 = vmatprep.subr.mxu0 0.0
        %744 = vmatpush1.xpose.msra.mxu0 0.0
        %745 = vmatprep.subr.mxu0 0.0
        %746 = vmatpush1.xpose.msra.mxu0 0.0
        %747 = vmatprep.subr.mxu0 0.0
        %748 = vmatpush1.xpose.msra.mxu0 0.0
        %749 = vmatprep.subr.mxu0 0.0
        %750 = vmatpush1.xpose.msra.mxu0 0.0
        %751 = vmatprep.subr.mxu0 0.0
        %752 = vmatpush1.xpose.msra.mxu0 0.0
        %753 = vmatprep.subr.mxu0 0.0
        %754 = vmatpush1.xpose.msra.mxu0 0.0
        %755 = vmatprep.subr.mxu0 0.0
        %756 = vmatpush1.xpose.msra.mxu0 0.0
        %757 = vmatprep.subr.mxu0 0.0
        %758 = vmatpush1.xpose.msra.mxu0 0.0
        %759 = vmatprep.subr.mxu0 0.0
        %760 = vmatpush1.xpose.msra.mxu0 0.0
        %761 = vmatprep.subr.mxu0 0.0
        %762 = vmatpush1.xpose.msra.mxu0 0.0
        %763 = vmatprep.subr.mxu0 0.0
        %764 = vmatpush1.xpose.msra.mxu0 0.0
        %765 = vmatprep.subr.mxu0 0.0
        %766 = vmatpush1.xpose.msra.mxu0 0.0
        %767 = vmatprep.subr.mxu0 0.0
        %768 = vmatpush1.xpose.msra.mxu0 0.0
        %769 = vmatprep.subr.mxu0 0.0
        %770 = vmatpush1.xpose.msra.mxu0 0.0
        %771 = vmatprep.subr.mxu0 0.0
        %772 = vmatpush1.xpose.msra.mxu0 0.0
        %773 = vmatprep.subr.mxu0 0.0
        %774 = vmatpush1.xpose.msra.mxu0 0.0
        %775 = vmatprep.subr.mxu0 0.0
        %776 = vmatpush1.xpose.msra.mxu0 0.0
        %777 = vmatprep.subr.mxu0 0.0
        %778 = vmatpush1.xpose.msra.mxu0 0.0
        %779 = vmatprep.subr.mxu0 0.0
        %780 = vmatpush1.xpose.msra.mxu0 0.0
        %781 = vmatprep.subr.mxu0 0.0
        %782 = vmatpush1.xpose.msra.mxu0 0.0
        %783 = vmatprep.subr.mxu0 0.0
        %784 = vmatpush1.xpose.msra.mxu0 0.0
        %785 = vmatprep.subr.mxu0 0.0
        %786 = vmatpush1.xpose.msra.mxu0 0.0
        %787 = vmatprep.subr.mxu0 0.0
        %788 = vmatpush1.xpose.msra.mxu0 0.0
        %789 = vmatprep.subr.mxu0 0.0
        %790 = vmatpush1.xpose.msra.mxu0 0.0
        %791 = vmatprep.mubr.f32.mxu0 %v622
        %792 = vmatmul.mubr.f32.gmra.mrb[0].mxu0 %v620
        %v793 = vpop.f32.mrb[0].mxu0
        %v794 = vadd.f32 0.0, %v793
        %v795 = vpop.f32.mrb[0].mxu0
        %796 = vmatprep.mubr.f32.mxu0 %v628
        %797 = vmatmul.mubr.f32.gmra.mrb[0].mxu0 %v626
        %v798 = vpop.f32.mrb[0].mxu0
        %v799 = vadd.f32 0.0, %v798
        %v800 = vpop.f32.mrb[0].mxu0
        %801 = vdwg.mxu0
        %802 = vmatprep.subr.mxu0 %v634
        %803 = vmatpush1.xpose.msra.mxu0 %v632
        %804 = vmatprep.subr.mxu0 %v640
        %805 = vmatpush1.xpose.msra.mxu0 %v638
        %806 = vmatprep.subr.mxu0 0.0
        %807 = vmatpush1.xpose.msra.mxu0 0.0
        %808 = vmatprep.subr.mxu0 0.0
        %809 = vmatpush1.xpose.msra.mxu0 0.0
        %810 = vmatprep.subr.mxu0 0.0
        %811 = vmatpush1.xpose.msra.mxu0 0.0
        %812 = vmatprep.subr.mxu0 0.0
        %813 = vmatpush1.xpose.msra.mxu0 0.0
        %814 = vmatprep.subr.mxu0 0.0
        %815 = vmatpush1.xpose.msra.mxu0 0.0
        %816 = vmatprep.subr.mxu0 0.0
        %817 = vmatpush1.xpose.msra.mxu0 0.0
        %818 = vmatprep.subr.mxu0 0.0
        %819 = vmatpush1.xpose.msra.mxu0 0.0
        %820 = vmatprep.subr.mxu0 0.0
        %821 = vmatpush1.xpose.msra.mxu0 0.0
        %822 = vmatprep.subr.mxu0 0.0
        %823 = vmatpush1.xpose.msra.mxu0 0.0
        %824 = vmatprep.subr.mxu0 0.0
        %825 = vmatpush1.xpose.msra.mxu0 0.0
        %826 = vmatprep.subr.mxu0 0.0
        %827 = vmatpush1.xpose.msra.mxu0 0.0
        %828 = vmatprep.subr.mxu0 0.0
        %829 = vmatpush1.xpose.msra.mxu0 0.0
        %830 = vmatprep.subr.mxu0 0.0
        %831 = vmatpush1.xpose.msra.mxu0 0.0
        %832 = vmatprep.subr.mxu0 0.0
        %833 = vmatpush1.xpose.msra.mxu0 0.0
        %834 = vmatprep.subr.mxu0 0.0
        %835 = vmatpush1.xpose.msra.mxu0 0.0
        %836 = vmatprep.subr.mxu0 0.0
        %837 = vmatpush1.xpose.msra.mxu0 0.0
        %838 = vmatprep.subr.mxu0 0.0
        %839 = vmatpush1.xpose.msra.mxu0 0.0
        %840 = vmatprep.subr.mxu0 0.0
        %841 = vmatpush1.xpose.msra.mxu0 0.0
        %842 = vmatprep.subr.mxu0 0.0
        %843 = vmatpush1.xpose.msra.mxu0 0.0
        %844 = vmatprep.subr.mxu0 0.0
        %845 = vmatpush1.xpose.msra.mxu0 0.0
        %846 = vmatprep.subr.mxu0 0.0
        %847 = vmatpush1.xpose.msra.mxu0 0.0
        %848 = vmatprep.subr.mxu0 0.0
        %849 = vmatpush1.xpose.msra.mxu0 0.0
        %850 = vmatprep.subr.mxu0 0.0
        %851 = vmatpush1.xpose.msra.mxu0 0.0
        %852 = vmatprep.subr.mxu0 0.0
        %853 = vmatpush1.xpose.msra.mxu0 0.0
        %854 = vmatprep.subr.mxu0 0.0
        %855 = vmatpush1.xpose.msra.mxu0 0.0
        %856 = vmatprep.subr.mxu0 0.0
        %857 = vmatpush1.xpose.msra.mxu0 0.0
        %858 = vmatprep.subr.mxu0 0.0
        %859 = vmatpush1.xpose.msra.mxu0 0.0
        %860 = vmatprep.subr.mxu0 0.0
        %861 = vmatpush1.xpose.msra.mxu0 0.0
        %862 = vmatprep.subr.mxu0 0.0
        %863 = vmatpush1.xpose.msra.mxu0 0.0
        %864 = vmatprep.subr.mxu0 0.0
        %865 = vmatpush1.xpose.msra.mxu0 0.0
        %866 = vmatprep.mubr.f32.mxu0 %v634
        %867 = vmatmul.mubr.f32.gmra.mrb[0].mxu0 %v632
        %v868 = vpop.f32.mrb[0].mxu0
        %v869 = vadd.f32 0.0, %v868
        %v870 = vpop.f32.mrb[0].mxu0
        %871 = vmatprep.mubr.f32.mxu0 %v640
        %872 = vmatmul.mubr.f32.gmra.mrb[0].mxu0 %v638
        %v873 = vpop.f32.mrb[0].mxu0
        %v874 = vadd.f32 0.0, %v873
        %v875 = vpop.f32.mrb[0].mxu0
        %876 = vdwg.mxu0
        %v877 = vxor.u32 %v794, 2147483648
        %v878 = vxor.u32 %v799, 2147483648
        %v879 = vxor.u32 %v869, 2147483648
        %v880 = vxor.u32 %v874, 2147483648
        %v881 = vmul.f32 %v877, 1.442695
        %v882 = vpow.pop %v881
        %v883 = vmul.f32 %v878, 1.442695
        %v884 = vpow.pop %v883
        %v885 = vmul.f32 %v879, 1.442695
        %v886 = vpow.pop %v885
        %v887 = vmul.f32 %v880, 1.442695
        %v888 = vpow.pop %v887
        %v889 = vadd.f32 %v882, 1.0
        %v890 = vadd.f32 %v884, 1.0
        %v891 = vadd.f32 %v886, 1.0
        %v892 = vadd.f32 %v888, 1.0
        %v893 = vrcp.pop %v889
        %v894 = vmul.f32 1.0, %v893
        %v895 = vrcp.pop %v890
        %v896 = vmul.f32 1.0, %v895
        %v897 = vrcp.pop %v891
        %v898 = vmul.f32 1.0, %v897
        %v899 = vrcp.pop %v892
        %v900 = vmul.f32 1.0, %v899
        %v901 = vmax.f32 %v894, 0.1
        %v902 = vmax.f32 %v896, 0.1
        %v903 = vmax.f32 %v898, 0.1
        %v904 = vmax.f32 %v900, 0.1
        %v905 = vld [vmem:[#allocation5] sm:$0xff]
        %v906 = vld [vmem:[#allocation5 + $0x8] sm:$0xff]
        %v907 = vmul.f32 %v901, %v905
        %v908 = vmul.f32 %v902, %v906
        %v909 = vmul.f32 %v903, %v905
        %v910 = vmul.f32 %v904, %v906
        %v911 = vld [vmem:[#allocation7] sm:$0xff]
        %v912 = vld [vmem:[#allocation7 + $0x8] sm:$0xff]
        %v913 = vadd.f32 %v907, %v911
        %v914 = vadd.f32 %v908, %v912
        %v915 = vadd.f32 %v909, %v911
        %v916 = vadd.f32 %v910, %v912
        %v917 = vld [vmem:[#allocation8] sm:$0xff]
        %v918 = vld [vmem:[#allocation8 + $0x8] sm:$0xff]
        %vm919 = vcmask 130048
        %v921 = vsel %vm919, %v913, 0
        %v924 = vsel %vm919, %v914, 0
        %v927 = vsel %vm919, %v915, 0
        %v930 = vsel %vm919, %v916, 0
        %932 = vmatprep.subr.mxu0 0.0
        %933 = vmatpush1.msra.mxu0 %v917
        %934 = vmatprep.subr.mxu0 0.0
        %935 = vmatpush1.msra.mxu0 %v918
        %936 = vmatprep.subr.mxu0 0.0
        %937 = vmatpush1.msra.mxu0 0.0
        %938 = vmatprep.subr.mxu0 0.0
        %939 = vmatpush1.msra.mxu0 0.0
        %940 = vmatprep.subr.mxu0 0.0
        %941 = vmatpush1.msra.mxu0 0.0
        %942 = vmatprep.subr.mxu0 0.0
        %943 = vmatpush1.msra.mxu0 0.0
        %944 = vmatprep.subr.mxu0 0.0
        %945 = vmatpush1.msra.mxu0 0.0
        %946 = vmatprep.subr.mxu0 0.0
        %947 = vmatpush1.msra.mxu0 0.0
        %948 = vmatprep.subr.mxu0 0.0
        %949 = vmatpush1.msra.mxu0 0.0
        %950 = vmatprep.subr.mxu0 0.0
        %951 = vmatpush1.msra.mxu0 0.0
        %952 = vmatprep.subr.mxu0 0.0
        %953 = vmatpush1.msra.mxu0 0.0
        %954 = vmatprep.subr.mxu0 0.0
        %955 = vmatpush1.msra.mxu0 0.0
        %956 = vmatprep.subr.mxu0 0.0
        %957 = vmatpush1.msra.mxu0 0.0
        %958 = vmatprep.subr.mxu0 0.0
        %959 = vmatpush1.msra.mxu0 0.0
        %960 = vmatprep.subr.mxu0 0.0
        %961 = vmatpush1.msra.mxu0 0.0
        %962 = vmatprep.subr.mxu0 0.0
        %963 = vmatpush1.msra.mxu0 0.0
        %964 = vmatprep.subr.mxu0 0.0
        %965 = vmatpush1.msra.mxu0 0.0
        %966 = vmatprep.subr.mxu0 0.0
        %967 = vmatpush1.msra.mxu0 0.0
        %968 = vmatprep.subr.mxu0 0.0
        %969 = vmatpush1.msra.mxu0 0.0
        %970 = vmatprep.subr.mxu0 0.0
        %971 = vmatpush1.msra.mxu0 0.0
        %972 = vmatprep.subr.mxu0 0.0
        %973 = vmatpush1.msra.mxu0 0.0
        %974 = vmatprep.subr.mxu0 0.0
        %975 = vmatpush1.msra.mxu0 0.0
        %976 = vmatprep.subr.mxu0 0.0
        %977 = vmatpush1.msra.mxu0 0.0
        %978 = vmatprep.subr.mxu0 0.0
        %979 = vmatpush1.msra.mxu0 0.0
        %980 = vmatprep.subr.mxu0 0.0
        %981 = vmatpush1.msra.mxu0 0.0
        %982 = vmatprep.subr.mxu0 0.0
        %983 = vmatpush1.msra.mxu0 0.0
        %984 = vmatprep.subr.mxu0 0.0
        %985 = vmatpush1.msra.mxu0 0.0
        %986 = vmatprep.subr.mxu0 0.0
        %987 = vmatpush1.msra.mxu0 0.0
        %988 = vmatprep.subr.mxu0 0.0
        %989 = vmatpush1.msra.mxu0 0.0
        %990 = vmatprep.subr.mxu0 0.0
        %991 = vmatpush1.msra.mxu0 0.0
        %992 = vmatprep.subr.mxu0 0.0
        %993 = vmatpush1.msra.mxu0 0.0
        %994 = vmatprep.subr.mxu0 0.0
        %995 = vmatpush1.msra.mxu0 0.0
        %996 = vmatprep.mubr.f32.mxu0 0.0
        %997 = vmatmul.mubr.f32.gmra.mrb[0].mxu0 %v921
        %v998 = vpop.f32.mrb[0].mxu0
        %v999 = vadd.f32 0.0, %v998
        %v1000 = vpop.f32.mrb[0].mxu0
        %1001 = vmatprep.mubr.f32.mxu0 0.0
        %1002 = vmatmul.mubr.f32.gmra.mrb[0].mxu0 %v924
        %v1003 = vpop.f32.mrb[0].mxu0
        %v1004 = vadd.f32 0.0, %v1003
        %v1005 = vpop.f32.mrb[0].mxu0
        %1006 = vmatprep.mubr.f32.mxu0 0.0
        %1007 = vmatmul.mubr.f32.gmra.mrb[0].mxu0 %v927
        %v1008 = vpop.f32.mrb[0].mxu0
        %v1009 = vadd.f32 0.0, %v1008
        %v1010 = vpop.f32.mrb[0].mxu0
        %1011 = vmatprep.mubr.f32.mxu0 0.0
        %1012 = vmatmul.mubr.f32.gmra.mrb[0].mxu0 %v930
        %v1013 = vpop.f32.mrb[0].mxu0
        %v1014 = vadd.f32 0.0, %v1013
        %v1015 = vpop.f32.mrb[0].mxu0
        %1016 = vdwg.mxu0
        %1017 = vst [vmem:[%s420] sm:$0xff] %v999
        %1018 = vst [vmem:[%s420 + $0x8] sm:$0xff] %v1004
        %1019 = vst [vmem:[%s420 + $0x10] sm:$0xff] %v1009
        %1020 = vst [vmem:[%s420 + $0x18] sm:$0xff] %v1014
        %v1021 = vsel %vm919, %v913, 0.0
        %1022 = vadd.xlane.f32.xlu0 %v1021
        %v1023 = vpop.xlane.xlu0 %1022
        %v1024 = vsel %vm919, %v914, 0.0
        %1025 = vadd.xlane.f32.xlu0 %v1024
        %v1026 = vpop.xlane.xlu0 %1025
        %v1027 = vsel %vm919, %v915, 0.0
        %1028 = vadd.xlane.f32.xlu0 %v1027
        %v1029 = vpop.xlane.xlu0 %1028
        %v1030 = vsel %vm919, %v916, 0.0
        %1031 = vadd.xlane.f32.xlu0 %v1030
        %v1032 = vpop.xlane.xlu0 %1031
        %v1033 = vrsqrt.pop %v1023
        %v1034 = vrsqrt.pop %v1026
        %v1035 = vrsqrt.pop %v1029
        %v1036 = vrsqrt.pop %v1032
        %v1037 = vmul.f32 %v1033, %v709
        %v1038 = vmul.f32 %v1034, %v714
        %v1039 = vmul.f32 %v1035, %v719
        %v1040 = vmul.f32 %v1036, %v724
        %1041 = vmatprep.subr.mxu0 0.0
        %1042 = vmatpush1.msra.mxu0 %v1037
        %1043 = vmatprep.subr.mxu0 0.0
        %1044 = vmatpush1.msra.mxu0 %v1038
        %1045 = vmatprep.subr.mxu0 0.0
        %1046 = vmatpush1.msra.mxu0 0.0
        %1047 = vmatprep.subr.mxu0 0.0
        %1048 = vmatpush1.msra.mxu0 0.0
        %1049 = vmatprep.subr.mxu0 0.0
        %1050 = vmatpush1.msra.mxu0 0.0
        %1051 = vmatprep.subr.mxu0 0.0
        %1052 = vmatpush1.msra.mxu0 0.0
        %1053 = vmatprep.subr.mxu0 0.0
        %1054 = vmatpush1.msra.mxu0 0.0
        %1055 = vmatprep.subr.mxu0 0.0
        %1056 = vmatpush1.msra.mxu0 0.0
        %1057 = vmatprep.subr.mxu0 0.0
        %1058 = vmatpush1.msra.mxu0 0.0
        %1059 = vmatprep.subr.mxu0 0.0
        %1060 = vmatpush1.msra.mxu0 0.0
        %1061 = vmatprep.subr.mxu0 0.0
        %1062 = vmatpush1.msra.mxu0 0.0
        %1063 = vmatprep.subr.mxu0 0.0
        %1064 = vmatpush1.msra.mxu0 0.0
        %1065 = vmatprep.subr.mxu0 0.0
        %1066 = vmatpush1.msra.mxu0 0.0
        %1067 = vmatprep.subr.mxu0 0.0
        %1068 = vmatpush1.msra.mxu0 0.0
        %1069 = vmatprep.subr.mxu0 0.0
        %1070 = vmatpush1.msra.mxu0 0.0
        %1071 = vmatprep.subr.mxu0 0.0
        %1072 = vmatpush1.msra.mxu0 0.0
        %1073 = vmatprep.subr.mxu0 0.0
        %1074 = vmatpush1.msra.mxu0 0.0
        %1075 = vmatprep.subr.mxu0 0.0
        %1076 = vmatpush1.msra.mxu0 0.0
        %1077 = vmatprep.subr.mxu0 0.0
        %1078 = vmatpush1.msra.mxu0 0.0
        %1079 = vmatprep.subr.mxu0 0.0
        %1080 = vmatpush1.msra.mxu0 0.0
        %1081 = vmatprep.subr.mxu0 0.0
        %1082 = vmatpush1.msra.mxu0 0.0
        %1083 = vmatprep.subr.mxu0 0.0
        %1084 = vmatpush1.msra.mxu0 0.0
        %1085 = vmatprep.subr.mxu0 0.0
        %1086 = vmatpush1.msra.mxu0 0.0
        %1087 = vmatprep.subr.mxu0 0.0
        %1088 = vmatpush1.msra.mxu0 0.0
        %1089 = vmatprep.subr.mxu0 0.0
        %1090 = vmatpush1.msra.mxu0 0.0
        %1091 = vmatprep.subr.mxu0 0.0
        %1092 = vmatpush1.msra.mxu0 0.0
        %1093 = vmatprep.subr.mxu0 0.0
        %1094 = vmatpush1.msra.mxu0 0.0
        %1095 = vmatprep.subr.mxu0 0.0
        %1096 = vmatpush1.msra.mxu0 0.0
        %1097 = vmatprep.subr.mxu0 0.0
        %1098 = vmatpush1.msra.mxu0 0.0
        %1099 = vmatprep.subr.mxu0 0.0
        %1100 = vmatpush1.msra.mxu0 0.0
        %1101 = vmatprep.subr.mxu0 0.0
        %1102 = vmatpush1.msra.mxu0 0.0
        %1103 = vmatprep.subr.mxu0 0.0
        %1104 = vmatpush1.msra.mxu0 0.0
        %1105 = vmatprep.mubr.f32.mxu0 0.0
        %1106 = vmatmul.mubr.f32.gmra.mrb[0].mxu0 %v921
        %v1107 = vpop.f32.mrb[0].mxu0
        %v1108 = vadd.f32 0.0, %v1107
        %v1109 = vpop.f32.mrb[0].mxu0
        %1110 = vmatprep.mubr.f32.mxu0 0.0
        %1111 = vmatmul.mubr.f32.gmra.mrb[0].mxu0 %v924
        %v1112 = vpop.f32.mrb[0].mxu0
        %v1113 = vadd.f32 0.0, %v1112
        %v1114 = vpop.f32.mrb[0].mxu0
        %1115 = vdwg.mxu0
        %1116 = vmatprep.subr.mxu0 0.0
        %1117 = vmatpush1.msra.mxu0 %v1039
        %1118 = vmatprep.subr.mxu0 0.0
        %1119 = vmatpush1.msra.mxu0 %v1040
        %1120 = vmatprep.subr.mxu0 0.0
        %1121 = vmatpush1.msra.mxu0 0.0
        %1122 = vmatprep.subr.mxu0 0.0
        %1123 = vmatpush1.msra.mxu0 0.0
        %1124 = vmatprep.subr.mxu0 0.0
        %1125 = vmatpush1.msra.mxu0 0.0
        %1126 = vmatprep.subr.mxu0 0.0
        %1127 = vmatpush1.msra.mxu0 0.0
        %1128 = vmatprep.subr.mxu0 0.0
        %1129 = vmatpush1.msra.mxu0 0.0
        %1130 = vmatprep.subr.mxu0 0.0
        %1131 = vmatpush1.msra.mxu0 0.0
        %1132 = vmatprep.subr.mxu0 0.0
        %1133 = vmatpush1.msra.mxu0 0.0
        %1134 = vmatprep.subr.mxu0 0.0
        %1135 = vmatpush1.msra.mxu0 0.0
        %1136 = vmatprep.subr.mxu0 0.0
        %1137 = vmatpush1.msra.mxu0 0.0
        %1138 = vmatprep.subr.mxu0 0.0
        %1139 = vmatpush1.msra.mxu0 0.0
        %1140 = vmatprep.subr.mxu0 0.0
        %1141 = vmatpush1.msra.mxu0 0.0
        %1142 = vmatprep.subr.mxu0 0.0
        %1143 = vmatpush1.msra.mxu0 0.0
        %1144 = vmatprep.subr.mxu0 0.0
        %1145 = vmatpush1.msra.mxu0 0.0
        %1146 = vmatprep.subr.mxu0 0.0
        %1147 = vmatpush1.msra.mxu0 0.0
        %1148 = vmatprep.subr.mxu0 0.0
        %1149 = vmatpush1.msra.mxu0 0.0
        %1150 = vmatprep.subr.mxu0 0.0
        %1151 = vmatpush1.msra.mxu0 0.0
        %1152 = vmatprep.subr.mxu0 0.0
        %1153 = vmatpush1.msra.mxu0 0.0
        %1154 = vmatprep.subr.mxu0 0.0
        %1155 = vmatpush1.msra.mxu0 0.0
        %1156 = vmatprep.subr.mxu0 0.0
        %1157 = vmatpush1.msra.mxu0 0.0
        %1158 = vmatprep.subr.mxu0 0.0
        %1159 = vmatpush1.msra.mxu0 0.0
        %1160 = vmatprep.subr.mxu0 0.0
        %1161 = vmatpush1.msra.mxu0 0.0
        %1162 = vmatprep.subr.mxu0 0.0
        %1163 = vmatpush1.msra.mxu0 0.0
        %1164 = vmatprep.subr.mxu0 0.0
        %1165 = vmatpush1.msra.mxu0 0.0
        %1166 = vmatprep.subr.mxu0 0.0
        %1167 = vmatpush1.msra.mxu0 0.0
        %1168 = vmatprep.subr.mxu0 0.0
        %1169 = vmatpush1.msra.mxu0 0.0
        %1170 = vmatprep.subr.mxu0 0.0
        %1171 = vmatpush1.msra.mxu0 0.0
        %1172 = vmatprep.subr.mxu0 0.0
        %1173 = vmatpush1.msra.mxu0 0.0
        %1174 = vmatprep.subr.mxu0 0.0
        %1175 = vmatpush1.msra.mxu0 0.0
        %1176 = vmatprep.subr.mxu0 0.0
        %1177 = vmatpush1.msra.mxu0 0.0
        %1178 = vmatprep.subr.mxu0 0.0
        %1179 = vmatpush1.msra.mxu0 0.0
        %1180 = vmatprep.mubr.f32.mxu0 0.0
        %1181 = vmatmul.mubr.f32.gmra.mrb[0].mxu0 %v927
        %v1182 = vpop.f32.mrb[0].mxu0
        %v1183 = vadd.f32 0.0, %v1182
        %v1184 = vpop.f32.mrb[0].mxu0
        %1185 = vmatprep.mubr.f32.mxu0 0.0
        %1186 = vmatmul.mubr.f32.gmra.mrb[0].mxu0 %v930
        %v1187 = vpop.f32.mrb[0].mxu0
        %v1188 = vadd.f32 0.0, %v1187
        %v1189 = vpop.f32.mrb[0].mxu0
        %1190 = vdwg.mxu0
        %v1191 = vmul.f32 %v1033, %v1108
        %v1192 = vmul.f32 %v1034, %v1113
        %v1193 = vmul.f32 %v1035, %v1183
        %v1194 = vmul.f32 %v1036, %v1188
        %vm1195 = vcmp.ge.f32.partialorder %v1191, 0.0
        %vm1196 = vcmp.ge.f32.partialorder %v1192, 0.0
        %vm1197 = vcmp.ge.f32.partialorder %v1193, 0.0
        %vm1198 = vcmp.ge.f32.partialorder %v1194, 0.0
        %v1199 = vmul.f32 %v1191, 0.01
        %v1200 = vmul.f32 %v1192, 0.01
        %v1201 = vmul.f32 %v1193, 0.01
        %v1202 = vmul.f32 %v1194, 0.01
        %v1203 = vsel %vm1195, %v1191, %v1199
        %v1204 = vsel %vm1196, %v1192, %v1200
        %v1205 = vsel %vm1197, %v1193, %v1201
        %v1206 = vsel %vm1198, %v1194, %v1202
        %1207 = vst [vmem:[%s413] sm:$0xff] %v1203
        %1208 = vst [vmem:[%s413 + $0x8] sm:$0xff] %v1204
        %1209 = vst [vmem:[%s413 + $0x10] sm:$0xff] %v1205
        %1210 = vst [vmem:[%s413 + $0x18] sm:$0xff] %v1206
        %s1211 = sand.u32 %s213, 1
        %s1212 = scalar_lea.sflag [#allocation4], %s1211
        %s1213 = sand.u32 %s213, 1
        %s1214 = smul.addr %s1213, 32
        %s1215 = scalar_lea.vmem [#allocation11], %s1214
        %s1216 = sand.u32 %s239, 1
        %s1217 = scalar_lea.sflag [#allocation13], %s1216
        %s1218 = sand.u32 %s239, 1
        %s1219 = smul.addr %s1218, 32
        %s1220 = scalar_lea.vmem [#allocation12], %s1219
        // Predicated region
        $region73: #{tpu_custom_call.1} parent=51 // pred_check
          %p1221 = pneg %p223
        $region74: #{tpu_custom_call.1} parent=51 // pred_check_branch
          %1223 = sbr.rel (%p1221) target = $region76
        $region75: #{tpu_custom_call.1} parent=51 // pred_region
          %s1224 = smul.u32 2, %s32
          %s1226 = ssub.s32 512, 512
          %1227 = vsyncadd %s1212, %s1226
          %s1228 = smul.addr %s1224, 2
          %s1229 = smul.addr %s1228, 128
          %s1230 = scalar_lea.hbm %s8, %s1229
          %s1231 = sshll.u32 %s1215, 4
          %s1232 = int_to_ptr.vmem [resolvable:$true] %s1231
          %1237 = dma.vmem_to_hbm [thread:$0]  %s1232, 512, %s1230, %s1212, 128, 128, 8
        $region76: #{tpu_custom_call.1} parent=51 // pred_fallthru
          _
        // Predicated region
        $region77: #{tpu_custom_call.1} parent=51 // pred_check
          %p1238 = pneg %p249
        $region78: #{tpu_custom_call.1} parent=51 // pred_check_branch
          %1240 = sbr.rel (%p1238) target = $region80
        $region79: #{tpu_custom_call.1} parent=51 // pred_region
          %s1241 = smul.u32 2, %s32
          %s1243 = ssub.s32 512, 512
          %1244 = vsyncadd %s1217, %s1243
          %s1245 = smul.addr %s1241, 2
          %s1246 = smul.addr %s1245, 128
          %s1247 = scalar_lea.hbm %s9, %s1246
          %s1248 = sshll.u32 %s1220, 4
          %s1249 = int_to_ptr.vmem [resolvable:$true] %s1248
          %1254 = dma.vmem_to_hbm [thread:$0]  %s1249, 512, %s1247, %s1217, 128, 128, 8
        $region80: #{tpu_custom_call.1} parent=51 // pred_fallthru
          _
      $region52: #{tpu_custom_call.1} parent=5 // pred_fallthru
        _
      %p1255 = scmp.le.s32.totalorder 2, %s27
      // Predicated region
      $region81: #{tpu_custom_call.1} parent=5 // pred_check
        %p1256 = pneg %p1255
      $region82: #{tpu_custom_call.1} parent=5 // pred_check_branch
        %1258 = sbr.rel (%p1256) target = $region84
      $region83: #{tpu_custom_call.1} parent=5 // pred_region
        %s1259 = ssub.s32 %s27, 2
        // Predicated region
        $region85: #{tpu_custom_call.1} parent=83 // pred_check
          %p1260 = pneg %p229
        $region86: #{tpu_custom_call.1} parent=83 // pred_check_branch
          %1262 = sbr.rel (%p1260) target = $region88
        $region87: #{tpu_custom_call.1} parent=83 // pred_region
          %s1263 = sand.u32 %s214, 1
          %s1264 = scalar_lea.sflag [#allocation4], %s1263
          %s1265 = sand.u32 %s214, 1
          %s1266 = smul.addr %s1265, 32
          %s1267 = scalar_lea.vmem [#allocation11], %s1266
          %1268 = dma.done %s1264, 512
        $region88: #{tpu_custom_call.1} parent=83 // pred_fallthru
          _
        // Predicated region
        $region89: #{tpu_custom_call.1} parent=83 // pred_check
          %p1269 = pneg %p255
        $region90: #{tpu_custom_call.1} parent=83 // pred_check_branch
          %1271 = sbr.rel (%p1269) target = $region92
        $region91: #{tpu_custom_call.1} parent=83 // pred_region
          %s1272 = sand.u32 %s240, 1
          %s1273 = scalar_lea.sflag [#allocation13], %s1272
          %s1274 = sand.u32 %s240, 1
          %s1275 = smul.addr %s1274, 32
          %s1276 = scalar_lea.vmem [#allocation12], %s1275
          %1277 = dma.done %s1273, 512
        $region92: #{tpu_custom_call.1} parent=83 // pred_fallthru
          _
      $region84: #{tpu_custom_call.1} parent=5 // pred_fallthru
        _
    $region6: #{tpu_custom_call.1} parent=1 // loop_footer
      %s31 = sadd.s32 1, %s27
    $region7: #{tpu_custom_call.1} parent=1 // loop_footer_branch
      %26 = sbr.rel target = $region3
    $region8: #{tpu_custom_call.1} parent=1 // loop_exit
      _
    %1278 = vsyncpa [#allocation3], 1
    %s1279 = scalar_lea.sflag [#allocation3], 1
    %1280 = vsyncpa %s1279, 1
    %1281 = vsyncpa [#allocation6], 1
    %1282 = vsyncpa [#allocation9], 1
    %1283 = vsyncpa [#allocation4], 1
    %s1284 = scalar_lea.sflag [#allocation4], 1
    %1285 = vsyncpa %s1284, 1
    %1286 = vsyncpa [#allocation13], 1
    %s1287 = scalar_lea.sflag [#allocation13], 1
    %1288 = vsyncpa %s1287, 1

</llo_original>
